<compile_context>
chip_gen: v5e
topology: v5e:2x2
jax: 0.10.0
libtpu: 0.0.40
codegen_flags: <defaults>
</compile_context>

<pallas_src>
import numpy as np
import jax
import jax.numpy as jnp
from jax.experimental import pallas as pl
from jax.experimental.pallas import tpu as pltpu


# --------------------------------------------------------------------------- #
# Helpers
# --------------------------------------------------------------------------- #
def _round_up(x, m):
    return ((x + m - 1) // m) * m


def _cdiv(a, b):
    return -(-a // b)


def _vmem_budget_bytes():
    """Per-generation VMEM budget for the pallas_call (leave headroom)."""
    cap = None
    try:
        cap = int(pltpu.get_tpu_info().vmem_capacity_bytes)
    except Exception:
        cap = None
    if not cap or cap <= 0:
        kind = ""
        try:
            kind = jax.devices()[0].device_kind.lower()
        except Exception:
            pass
        # 128 MiB physical on v5e/v6e, 64 MiB on v7x; default conservative.
        cap = (128 << 20) if any(t in kind for t in ("v5", "v6")) else (64 << 20)
    # 3/4 of physical, capped at 96 MiB (=> ~48 MiB on v7x's 64 MiB VMEM).
    return int(min((cap * 3) // 4, 96 << 20))


def _prefer_fused_second_layer():
    """v6e/v7x have a 256-deep MXU, so one K=2*Hp pass costs the same as K=Hp;
    on the 128-deep MXUs (v2..v5e) the block-diagonal packing doubles MAC work,
    so keep the two split K=Hp matmuls there."""
    try:
        kind = jax.devices()[0].device_kind.lower()
    except Exception:
        return True
    return not any(t in kind for t in ("v2", "v3", "v4", "v5"))


# --------------------------------------------------------------------------- #
# Kernel
# --------------------------------------------------------------------------- #
def _mpnn_readout_kernel(x_ref, w1_ref, b1_ref, w2_ref, b2_ref, aux_ref):
    G, Tp = aux_ref.shape
    rows, F2 = x_ref.shape
    Np = rows // G
    F = F2 // 2
    Hp = w1_ref.shape[1] // 2
    fused2 = (w2_ref.shape[1] == 2 * Tp)          # static (trace-time) branch

    x = x_ref[...]                                # (G*Np, 2F) bf16  [h0 | hT]

    # Fused first layer for both sub-networks (one K=2F MXU pass):
    #   z[:, :Hp] = i-net hidden from [h0 | hT]
    #   z[:, Hp:] = j-net hidden from hT (the h0 rows of those columns are 0)
    z = jnp.dot(x, w1_ref[...], preferred_element_type=jnp.float32) + b1_ref[...]
    z = jnp.maximum(z, 0.0)
    zb = z.astype(w2_ref.dtype)                   # bf16 operand for the MXU

    b2 = b2_ref[...]                              # (1, 2*Tp) f32 = [bi2 | bj2]
    if fused2:
        # One K=2*Hp pass against the block-diagonal [[wi2, 0], [0, wj2]].
        out = jnp.dot(zb, w2_ref[...], preferred_element_type=jnp.float32) + b2
        i_out = out[:, :Tp]
        j_out = out[:, Tp:]
    else:
        w2 = w2_ref[...]                          # (2*Hp, Tp) = [wi2 ; wj2]
        i_out = (jnp.dot(zb[:, :Hp], w2[:Hp], preferred_element_type=jnp.float32)
                 + b2[:, :Tp])
        j_out = (jnp.dot(zb[:, Hp:], w2[Hp:], preferred_element_type=jnp.float32)
                 + b2[:, Tp:])

    # sigmoid via EUP exp + approximate reciprocal (keeps the divide off the VALU)
    sig = pl.reciprocal(1.0 + jnp.exp(-i_out), approx=True)
    nn_res = sig * j_out                          # (G*Np, Tp) f32

    # Node mask: drop nodes whose h0 feature sum is <= 0 (also kills all padding).
    h0_sum = jnp.sum(x[:, :F].astype(jnp.float32), axis=1, keepdims=True)
    nn_res = jnp.where(h0_sum > 0, nn_res, 0.0)

    # Per-graph node sum -> one lane-dense (G, Tp) aux slab per grid step.
    aux_ref[...] = jnp.sum(nn_res.reshape(G, Np, Tp), axis=1)


# --------------------------------------------------------------------------- #
# Wrapper
# --------------------------------------------------------------------------- #
def mpnn_readout(h0, hT, params, *, graphs_per_step=None, fuse_second_layer=None):
    """h0, hT: (B, N, F) arrays. params: dict of the two MLPs' weights.
    Returns (aux, nn_res) mirroring ReadoutFunction('mpnn').forward."""
    B, N, F = h0.shape
    H = params["wi1a"].shape[1]
    T = params["wi2"].shape[1]

    if fuse_second_layer is None:
        fuse_second_layer = _prefer_fused_second_layer()

    Np = _round_up(N, 8)        # node rows -> sublane aligned
    Hp = _round_up(H, 128)      # hidden width -> lane-aligned column splits
    Tp = _round_up(T, 128)      # target width -> lane-dense aux stores
    F2 = 2 * F

    f32, bf16 = jnp.float32, jnp.bfloat16

    # ---- packed, lane-padded weights (zero padding is exactly a no-op through
    #      ReLU and the second layer; zero h0-rows make the j-columns hT-only) --
    w1 = jnp.zeros((F2, 2 * Hp), f32)
    w1 = w1.at[:F, :H].set(params["wi1a"].astype(f32))
    w1 = w1.at[F:, :H].set(params["wi1b"].astype(f32))
    w1 = w1.at[F:, Hp:Hp + H].set(params["wj1"].astype(f32))
    b1 = jnp.zeros((1, 2 * Hp), f32)
    b1 = b1.at[:, :H].set(params["bi1"].astype(f32))
    b1 = b1.at[:, Hp:Hp + H].set(params["bj1"].astype(f32))

    if fuse_second_layer:
        w2 = jnp.zeros((2 * Hp, 2 * Tp), f32)
        w2 = w2.at[:H, :T].set(params["wi2"].astype(f32))
        w2 = w2.at[Hp:Hp + H, Tp:Tp + T].set(params["wj2"].astype(f32))
    else:
        w2 = jnp.zeros((2 * Hp, Tp), f32)
        w2 = w2.at[:H, :T].set(params["wi2"].astype(f32))
        w2 = w2.at[Hp:Hp + H, :T].set(params["wj2"].astype(f32))
    b2 = jnp.zeros((1, 2 * Tp), f32)
    b2 = b2.at[:, :T].set(params["bi2"].astype(f32))
    b2 = b2.at[:, Tp:Tp + T].set(params["bj2"].astype(f32))

    w1_b = w1.astype(bf16)
    w2_b = w2.astype(bf16)

    # ---- graphs per grid step (G) from the real per-row VMEM working set ------
    vmem_budget = _vmem_budget_bytes()
    w2_cols = w2.shape[1]
    weight_bytes = 2 * (F2 * 2 * Hp + 2 * Hp * w2_cols) + 4 * (2 * Hp + 2 * Tp)
    bytes_per_row = (
        2 * F2 * 2              # bf16 state slab x 2 pipeline buffers
        + F * 4                 # f32 h0 columns for the mask sum
        + 2 * Hp * (4 + 2)      # z (f32) + zb (bf16)
        + 2 * Tp * 4            # second-layer output (f32)
        + 3 * Tp * 4            # exp / reciprocal / nn_res temporaries
    )
    budget = vmem_budget - weight_bytes - (4 << 20)        # margin for Mosaic scratch
    max_rows = min(4096, max(Np, budget // bytes_per_row))
    max_g = max(1, int(max_rows) // Np)
    if max_g >= 8:
        max_g = (max_g // 8) * 8

    if graphs_per_step is not None:
        G = max(1, min(int(graphs_per_step), B))
    elif B <= 8 or max_g < 8:
        G = min(B, max_g) if max_g < B else B              # single step when tiny
    else:
        # At least 2 grid steps so the state DMA pipelines against compute.
        G = min(max_g, _round_up(_cdiv(B, 2), 8))

    steps = _cdiv(B, G)
    if steps > 1 and G % 8 != 0:
        # Multi-step aux blocks need an 8-aligned sublane dim (dense vst stores,
        # and the (8,128) block rule); padded graphs are zeros -> masked out.
        G = min(_round_up(G, 8), _round_up(B, 8))
        steps = _cdiv(B, G)
    Bp = steps * G

    # ---- packed [h0 | hT] state slab (bf16 for the MXU fast path) -------------
    x = jnp.concatenate([h0.astype(f32), hT.astype(f32)], axis=-1)   # (B, N, 2F)
    x = jnp.pad(x, ((0, Bp - B), (0, Np - N), (0, 0)))
    x = x.reshape(Bp * Np, F2).astype(bf16)

    rows_total = Bp * Np
    cost = pl.CostEstimate(
        flops=2 * rows_total * (F2 * 2 * Hp + 2 * Hp * w2_cols),
        transcendentals=2 * rows_total * Tp,
        bytes_accessed=rows_total * F2 * 2 + weight_bytes + Bp * Tp * 4,
    )

    def _weight_spec(arr, buffered):
        if buffered:
            # Resident, constant-index weight blocks don't need double buffering.
            return pl.BlockSpec(arr.shape, lambda s: (0,) * arr.ndim,
                                pipeline_mode=pl.Buffered(1))
        return pl.BlockSpec(arr.shape, lambda s: (0,) * arr.ndim)

    def _call(buffered):
        grid_spec = pltpu.PrefetchScalarGridSpec(
            num_scalar_prefetch=0,
            grid=(steps,),
            in_specs=[
                pl.BlockSpec((G * Np, F2), lambda s: (s, 0)),      # [h0|hT] slab
                _weight_spec(w1_b, buffered), _weight_spec(b1, buffered),
                _weight_spec(w2_b, buffered), _weight_spec(b2, buffered),
            ],
            out_specs=pl.BlockSpec((G, Tp), lambda s: (s, 0)),     # aux (Bp, Tp)
        )
        return pl.pallas_call(
            _mpnn_readout_kernel,
            grid_spec=grid_spec,
            out_shape=jax.ShapeDtypeStruct((Bp, Tp), f32),
            compiler_params=pltpu.CompilerParams(
                # Grid steps are fully independent (no resident output block),
                # so the graph axis can shard across cores (v7x megacore).
                dimension_semantics=("parallel",),
                vmem_limit_bytes=int(vmem_budget),
            ),
            cost_estimate=cost,
        )(x, w1_b, b1, w2_b, b2)

    try:
        aux_p = _call(True)
    except Exception:
        # Fallback for Pallas builds without pipeline_mode support.
        aux_p = _call(False)

    aux = aux_p[:B, :T]

    # ---- last-graph nn_res: tiny plain-XLA epilogue on one (N, F) graph -------
    # Keeping it out of the pallas_call removes the resident constant-index
    # output block (and its per-step predicate) and avoids a per-(B % G) recompile.
    x_last = jnp.concatenate([h0[B - 1].astype(f32), hT[B - 1].astype(f32)],
                             axis=1).astype(bf16)
    z = jnp.maximum(jnp.dot(x_last, w1_b, preferred_element_type=f32) + b1, 0.0)
    zb = z.astype(bf16)
    if fuse_second_layer:
        out = jnp.dot(zb, w2_b, preferred_element_type=f32) + b2
        i_out, j_out = out[:, :Tp], out[:, Tp:]
    else:
        i_out = jnp.dot(zb[:, :Hp], w2_b[:Hp], preferred_element_type=f32) + b2[:, :Tp]
        j_out = jnp.dot(zb[:, Hp:], w2_b[Hp:], preferred_element_type=f32) + b2[:, Tp:]
    nn_res = jax.nn.sigmoid(i_out) * j_out
    mask = (jnp.sum(h0[B - 1].astype(f32), axis=1, keepdims=True) > 0).astype(nn_res.dtype)
    nn_res = mask * nn_res

    return aux, nn_res[:, :T]


# --------------------------------------------------------------------------- #
# Pure-JAX reference (mirrors the PyTorch r_mpnn loop)
# --------------------------------------------------------------------------- #
def mpnn_readout_reference(h0, hT, params, matmul_dtype=None):
    def mm(a, w):
        if matmul_dtype is not None:
            a = a.astype(matmul_dtype)
            w = w.astype(matmul_dtype)
        return jnp.dot(a, w, preferred_element_type=jnp.float32)

    B = h0.shape[0]
    wi1 = jnp.concatenate([params["wi1a"], params["wi1b"]], axis=0)
    aux, nn_res = [], None
    for i in range(B):
        cat = jnp.concatenate([h0[i], hT[i]], axis=1)
        z1 = jnp.maximum(mm(cat, wi1) + params["bi1"], 0.0)
        y1 = jnp.maximum(mm(hT[i], params["wj1"]) + params["bj1"], 0.0)
        i_out = mm(z1, params["wi2"]) + params["bi2"]
        j_out = mm(y1, params["wj2"]) + params["bj2"]
        res = jax.nn.sigmoid(i_out) * j_out
        mask = (jnp.sum(h0[i], axis=1, keepdims=True) > 0).astype(res.dtype)
        res = mask * res
        aux.append(jnp.sum(res, axis=0))
        nn_res = res
    return jnp.stack(aux, axis=0), nn_res


# --------------------------------------------------------------------------- #
# Example / self-test
# --------------------------------------------------------------------------- #
if __name__ == "__main__":
    # Small shapes consistent with init_mpnn(params={'in': F, 'target': T}).
    B, N, F = 16, 8, 32        # graphs, nodes per graph, node-feature dim ('in')
    H, T = 32, 16              # NNet hidden width, 'target'

    key = jax.random.PRNGKey(0)
    keys = jax.random.split(key, 12)

    h0 = jax.random.normal(keys[0], (B, N, F), dtype=jnp.float32)
    hT = jax.random.normal(keys[1], (B, N, F), dtype=jnp.float32)
    h0 = h0.at[:, -2:, :].set(0.0)     # exercise the (sum(h0) > 0) node mask

    s = 0.1
    params = {
        # NNet_i : Linear(2F, H) -> ReLU -> Linear(H, T); first weight split h0/hT.
        "wi1a": s * jax.random.normal(keys[2], (F, H), dtype=jnp.float32),
        "wi1b": s * jax.random.normal(keys[3], (F, H), dtype=jnp.float32),
        "bi1":  s * jax.random.normal(keys[4], (1, H), dtype=jnp.float32),
        "wi2":  s * jax.random.normal(keys[5], (H, T), dtype=jnp.float32),
        "bi2":  s * jax.random.normal(keys[6], (1, T), dtype=jnp.float32),
        # NNet_j : Linear(F, H) -> ReLU -> Linear(H, T)
        "wj1":  s * jax.random.normal(keys[7], (F, H), dtype=jnp.float32),
        "bj1":  s * jax.random.normal(keys[8], (1, H), dtype=jnp.float32),
        "wj2":  s * jax.random.normal(keys[9], (H, T), dtype=jnp.float32),
        "bj2":  s * jax.random.normal(keys[10], (1, T), dtype=jnp.float32),
    }

    aux_f32, nn_f32 = mpnn_readout_reference(h0, hT, params)
    aux_b16, nn_b16 = mpnn_readout_reference(h0, hT, params, matmul_dtype=jnp.bfloat16)

    # 1) Auto config: >= 2 pipelined grid steps, G a multiple of 8.
    aux, nn_res = mpnn_readout(h0, hT, params)
    jax.block_until_ready((aux, nn_res))
    np.testing.assert_allclose(np.asarray(aux), np.asarray(aux_b16), rtol=1e-2, atol=1e-2)
    np.testing.assert_allclose(np.asarray(nn_res), np.asarray(nn_b16), rtol=1e-2, atol=1e-2)
    np.testing.assert_allclose(np.asarray(aux), np.asarray(aux_f32), rtol=5e-2, atol=5e-2)
    np.testing.assert_allclose(np.asarray(nn_res), np.asarray(nn_f32), rtol=5e-2, atol=5e-2)

    # 2) Single grid step (output block == full array path).
    aux2, nn2 = mpnn_readout(h0, hT, params, graphs_per_step=B)
    jax.block_until_ready((aux2, nn2))
    np.testing.assert_allclose(np.asarray(aux2), np.asarray(aux_b16), rtol=1e-2, atol=1e-2)

    # 3) Forced tiny graphs_per_step: exercises the multiple-of-8 rounding path.
    aux3, nn3 = mpnn_readout(h0, hT, params, graphs_per_step=3)
    jax.block_until_ready((aux3, nn3))
    np.testing.assert_allclose(np.asarray(aux3), np.asarray(aux_b16), rtol=1e-2, atol=1e-2)

    # 4) The other second-layer packing (fused vs split), regardless of hardware.
    aux4, nn4 = mpnn_readout(h0, hT, params,
                             fuse_second_layer=not _prefer_fused_second_layer())
    jax.block_until_ready((aux4, nn4))
    np.testing.assert_allclose(np.asarray(aux4), np.asarray(aux_b16), rtol=1e-2, atol=1e-2)

    print("KERNEL_OK")
</pallas_src>

<mosaic_0001>
module attributes {stable_mosaic.version = 11 : i64} {
  func.func @_mpnn_readout_kernel(%arg0: i32, %arg1: memref<64x64xbf16, #tpu.memory_space<vmem>>, %arg2: memref<64x256xbf16, #tpu.memory_space<vmem>>, %arg3: memref<1x256xf32, #tpu.memory_space<vmem>>, %arg4: memref<256x256xbf16, #tpu.memory_space<vmem>>, %arg5: memref<1x256xf32, #tpu.memory_space<vmem>>, %arg6: memref<8x128xf32, #tpu.memory_space<vmem>>) attributes {dimension_semantics = [#tpu.dimension_semantics<parallel>], iteration_bounds = array<i64: 2>, scalar_prefetch = 0 : i64, scratch_operands = 0 : i64, tpu.core_type = #tpu.core_type<tc>, window_params = [{transform_indices = @transform_0, window_bounds = array<i64: 64, 64>}, {pipeline_mode = #tpu.pipeline_mode<synchronous>, transform_indices = @transform_1, window_bounds = array<i64: 64, 256>}, {pipeline_mode = #tpu.pipeline_mode<synchronous>, transform_indices = @transform_2, window_bounds = array<i64: 1, 256>}, {pipeline_mode = #tpu.pipeline_mode<synchronous>, transform_indices = @transform_3, window_bounds = array<i64: 256, 256>}, {pipeline_mode = #tpu.pipeline_mode<synchronous>, transform_indices = @transform_4, window_bounds = array<i64: 1, 256>}, {transform_indices = @transform_5, window_bounds = array<i64: 8, 128>}]} {
    %c0 = arith.constant 0 : index
    %c0_0 = arith.constant 0 : index
    %0 = vector.load %arg1[%c0, %c0_0] : memref<64x64xbf16, #tpu.memory_space<vmem>>, vector<64x64xbf16>
    %c0_1 = arith.constant 0 : index
    %c0_2 = arith.constant 0 : index
    %1 = vector.load %arg2[%c0_1, %c0_2] : memref<64x256xbf16, #tpu.memory_space<vmem>>, vector<64x256xbf16>
    %cst = arith.constant dense<0.000000e+00> : vector<64x256xf32>
    %2 = tpu.matmul %0, %1, %cst {dimension_numbers = #tpu.dot_dimension_numbers<[1], [0], [0], [1], [0, 0, 1, 1], [], []>} : vector<64x64xbf16>, vector<64x256xbf16>, vector<64x256xf32> -> vector<64x256xf32>
    %c0_3 = arith.constant 0 : index
    %c0_4 = arith.constant 0 : index
    %3 = vector.load %arg3[%c0_3, %c0_4] : memref<1x256xf32, #tpu.memory_space<vmem>>, vector<1x256xf32>
    %4 = vector.broadcast %3 : vector<1x256xf32> to vector<64x256xf32>
    %5 = arith.addf %2, %4 : vector<64x256xf32>
    %cst_5 = arith.constant 0.000000e+00 : f32
    %6 = vector.broadcast %cst_5 : f32 to vector<64x256xf32>
    %7 = arith.maximumf %5, %6 : vector<64x256xf32>
    %8 = arith.truncf %7 : vector<64x256xf32> to vector<64x256xbf16>
    %c0_6 = arith.constant 0 : index
    %c0_7 = arith.constant 0 : index
    %9 = vector.load %arg5[%c0_6, %c0_7] : memref<1x256xf32, #tpu.memory_space<vmem>>, vector<1x256xf32>
    %c0_8 = arith.constant 0 : index
    %c0_9 = arith.constant 0 : index
    %10 = vector.load %arg4[%c0_8, %c0_9] : memref<256x256xbf16, #tpu.memory_space<vmem>>, vector<256x256xbf16>
    %cst_10 = arith.constant dense<0.000000e+00> : vector<64x256xf32>
    %11 = tpu.matmul %8, %10, %cst_10 {dimension_numbers = #tpu.dot_dimension_numbers<[1], [0], [0], [1], [0, 0, 1, 1], [], []>} : vector<64x256xbf16>, vector<256x256xbf16>, vector<64x256xf32> -> vector<64x256xf32>
    %12 = vector.broadcast %9 : vector<1x256xf32> to vector<64x256xf32>
    %13 = arith.addf %11, %12 : vector<64x256xf32>
    %14 = vector.extract_strided_slice %13 {offsets = [0, 0], sizes = [64, 128], strides = [1, 1]} : vector<64x256xf32> to vector<64x128xf32>
    %15 = vector.extract_strided_slice %13 {offsets = [0, 128], sizes = [64, 128], strides = [1, 1]} : vector<64x256xf32> to vector<64x128xf32>
    %cst_11 = arith.constant 0.000000e+00 : f32
    %16 = vector.broadcast %cst_11 : f32 to vector<64x128xf32>
    %17 = arith.subf %16, %14 : vector<64x128xf32>
    %18 = math.exp %17 : vector<64x128xf32>
    %cst_12 = arith.constant 1.000000e+00 : f32
    %19 = vector.broadcast %cst_12 : f32 to vector<64x128xf32>
    %20 = arith.addf %19, %18 : vector<64x128xf32>
    %21 = tpu.reciprocal %20 {approx = true} : vector<64x128xf32> -> vector<64x128xf32>
    %22 = arith.mulf %21, %15 : vector<64x128xf32>
    %23 = vector.extract_strided_slice %0 {offsets = [0, 0], sizes = [64, 32], strides = [1, 1]} : vector<64x64xbf16> to vector<64x32xbf16>
    %24 = arith.extf %23 : vector<64x32xbf16> to vector<64x32xf32>
    %cst_13 = arith.constant dense<0.000000e+00> : vector<64xf32>
    %25 = vector.multi_reduction <add>, %24, %cst_13 [1] : vector<64x32xf32> to vector<64xf32>
    %26 = vector.shape_cast %25 : vector<64xf32> to vector<64x1xf32>
    %cst_14 = arith.constant 0.000000e+00 : f32
    %27 = vector.broadcast %cst_14 : f32 to vector<64x1xf32>
    %28 = arith.cmpf ogt, %26, %27 : vector<64x1xf32>
    %cst_15 = arith.constant 0.000000e+00 : f32
    %29 = vector.shape_cast %28 : vector<64x1xi1> to vector<64x1xi1>
    %30 = vector.broadcast %29 : vector<64x1xi1> to vector<64x128xi1>
    %31 = vector.broadcast %cst_15 : f32 to vector<64x128xf32>
    %32 = arith.select %30, %22, %31 : vector<64x128xi1>, vector<64x128xf32>
    %33 = vector.shape_cast %32 : vector<64x128xf32> to vector<8x8x128xf32>
    %cst_16 = arith.constant dense<0.000000e+00> : vector<8x128xf32>
    %34 = vector.multi_reduction <add>, %33, %cst_16 [1] : vector<8x8x128xf32> to vector<8x128xf32>
    %c0_17 = arith.constant 0 : index
    %c0_18 = arith.constant 0 : index
    %35 = vector.load %arg6[%c0_17, %c0_18] : memref<8x128xf32, #tpu.memory_space<vmem>>, vector<8x128xf32>
    tpu.vector_store %arg6[%c0_17, %c0_18], %34 {strides = array<i32>} : memref<8x128xf32, #tpu.memory_space<vmem>>, vector<8x128xf32>,
    return
  }
  func.func @transform_0(%arg0: i32) -> (i32, i32) {
    %c0_i32 = arith.constant 0 : i32
    %c0_i32_0 = arith.constant 0 : i32
    return %arg0, %c0_i32 : i32, i32
  }
  func.func @transform_1(%arg0: i32) -> (i32, i32) {
    %c0_i32 = arith.constant 0 : i32
    %c0_i32_0 = arith.constant 0 : i32
    %c0_i32_1 = arith.constant 0 : i32
    return %c0_i32, %c0_i32_0 : i32, i32
  }
  func.func @transform_2(%arg0: i32) -> (i32, i32) {
    %c0_i32 = arith.constant 0 : i32
    %c0_i32_0 = arith.constant 0 : i32
    %c0_i32_1 = arith.constant 0 : i32
    return %c0_i32, %c0_i32_0 : i32, i32
  }
  func.func @transform_3(%arg0: i32) -> (i32, i32) {
    %c0_i32 = arith.constant 0 : i32
    %c0_i32_0 = arith.constant 0 : i32
    %c0_i32_1 = arith.constant 0 : i32
    return %c0_i32, %c0_i32_0 : i32, i32
  }
  func.func @transform_4(%arg0: i32) -> (i32, i32) {
    %c0_i32 = arith.constant 0 : i32
    %c0_i32_0 = arith.constant 0 : i32
    %c0_i32_1 = arith.constant 0 : i32
    return %c0_i32, %c0_i32_0 : i32, i32
  }
  func.func @transform_5(%arg0: i32) -> (i32, i32) {
    %c0_i32 = arith.constant 0 : i32
    %c0_i32_0 = arith.constant 0 : i32
    return %arg0, %c0_i32 : i32, i32
  }
}

module attributes {stable_mosaic.version = 11 : i64} {
  func.func @_mpnn_readout_kernel(%arg0: i32, %arg1: memref<64x64xbf16, #tpu.memory_space<vmem>>, %arg2: memref<64x256xbf16, #tpu.memory_space<vmem>>, %arg3: memref<1x256xf32, #tpu.memory_space<vmem>>, %arg4: memref<256x256xbf16, #tpu.memory_space<vmem>>, %arg5: memref<1x256xf32, #tpu.memory_space<vmem>>, %arg6: memref<8x128xf32, #tpu.memory_space<vmem>>) attributes {dimension_semantics = [#tpu.dimension_semantics<parallel>], iteration_bounds = array<i64: 2>, scalar_prefetch = 0 : i64, scratch_operands = 0 : i64, tpu.core_type = #tpu.core_type<tc>, window_params = [{transform_indices = @transform_0, window_bounds = array<i64: 64, 64>}, {pipeline_mode = #tpu.pipeline_mode<synchronous>, transform_indices = @transform_1, window_bounds = array<i64: 64, 256>}, {pipeline_mode = #tpu.pipeline_mode<synchronous>, transform_indices = @transform_2, window_bounds = array<i64: 1, 256>}, {pipeline_mode = #tpu.pipeline_mode<synchronous>, transform_indices = @transform_3, window_bounds = array<i64: 256, 256>}, {pipeline_mode = #tpu.pipeline_mode<synchronous>, transform_indices = @transform_4, window_bounds = array<i64: 1, 256>}, {transform_indices = @transform_5, window_bounds = array<i64: 8, 128>}]} {
    %c0 = arith.constant 0 : index
    %c0_0 = arith.constant 0 : index
    %0 = vector.load %arg1[%c0, %c0_0] : memref<64x64xbf16, #tpu.memory_space<vmem>>, vector<64x64xbf16>
    %c0_1 = arith.constant 0 : index
    %c0_2 = arith.constant 0 : index
    %1 = vector.load %arg2[%c0_1, %c0_2] : memref<64x256xbf16, #tpu.memory_space<vmem>>, vector<64x256xbf16>
    %cst = arith.constant dense<0.000000e+00> : vector<64x256xf32>
    %2 = tpu.matmul %0, %1, %cst {dimension_numbers = #tpu.dot_dimension_numbers<[1], [0], [0], [1], [0, 0, 1, 1], [], []>} : vector<64x64xbf16>, vector<64x256xbf16>, vector<64x256xf32> -> vector<64x256xf32>
    %c0_3 = arith.constant 0 : index
    %c0_4 = arith.constant 0 : index
    %3 = vector.load %arg3[%c0_3, %c0_4] : memref<1x256xf32, #tpu.memory_space<vmem>>, vector<1x256xf32>
    %4 = vector.broadcast %3 : vector<1x256xf32> to vector<64x256xf32>
    %5 = arith.addf %2, %4 : vector<64x256xf32>
    %cst_5 = arith.constant 0.000000e+00 : f32
    %6 = vector.broadcast %cst_5 : f32 to vector<64x256xf32>
    %7 = arith.maximumf %5, %6 : vector<64x256xf32>
    %8 = arith.truncf %7 : vector<64x256xf32> to vector<64x256xbf16>
    %c0_6 = arith.constant 0 : index
    %c0_7 = arith.constant 0 : index
    %9 = vector.load %arg5[%c0_6, %c0_7] : memref<1x256xf32, #tpu.memory_space<vmem>>, vector<1x256xf32>
    %c0_8 = arith.constant 0 : index
    %c0_9 = arith.constant 0 : index
    %10 = vector.load %arg4[%c0_8, %c0_9] : memref<256x256xbf16, #tpu.memory_space<vmem>>, vector<256x256xbf16>
    %cst_10 = arith.constant dense<0.000000e+00> : vector<64x256xf32>
    %11 = tpu.matmul %8, %10, %cst_10 {dimension_numbers = #tpu.dot_dimension_numbers<[1], [0], [0], [1], [0, 0, 1, 1], [], []>} : vector<64x256xbf16>, vector<256x256xbf16>, vector<64x256xf32> -> vector<64x256xf32>
    %12 = vector.broadcast %9 : vector<1x256xf32> to vector<64x256xf32>
    %13 = arith.addf %11, %12 : vector<64x256xf32>
    %14 = vector.extract_strided_slice %13 {offsets = [0, 0], sizes = [64, 128], strides = [1, 1]} : vector<64x256xf32> to vector<64x128xf32>
    %15 = vector.extract_strided_slice %13 {offsets = [0, 128], sizes = [64, 128], strides = [1, 1]} : vector<64x256xf32> to vector<64x128xf32>
    %cst_11 = arith.constant 0.000000e+00 : f32
    %16 = vector.broadcast %cst_11 : f32 to vector<64x128xf32>
    %17 = arith.subf %16, %14 : vector<64x128xf32>
    %18 = math.exp %17 : vector<64x128xf32>
    %cst_12 = arith.constant 1.000000e+00 : f32
    %19 = vector.broadcast %cst_12 : f32 to vector<64x128xf32>
    %20 = arith.addf %19, %18 : vector<64x128xf32>
    %21 = tpu.reciprocal %20 {approx = true} : vector<64x128xf32> -> vector<64x128xf32>
    %22 = arith.mulf %21, %15 : vector<64x128xf32>
    %23 = vector.extract_strided_slice %0 {offsets = [0, 0], sizes = [64, 32], strides = [1, 1]} : vector<64x64xbf16> to vector<64x32xbf16>
    %24 = arith.extf %23 : vector<64x32xbf16> to vector<64x32xf32>
    %cst_13 = arith.constant dense<0.000000e+00> : vector<64xf32>
    %25 = vector.multi_reduction <add>, %24, %cst_13 [1] : vector<64x32xf32> to vector<64xf32>
    %26 = vector.shape_cast %25 : vector<64xf32> to vector<64x1xf32>
    %cst_14 = arith.constant 0.000000e+00 : f32
    %27 = vector.broadcast %cst_14 : f32 to vector<64x1xf32>
    %28 = arith.cmpf ogt, %26, %27 : vector<64x1xf32>
    %cst_15 = arith.constant 0.000000e+00 : f32
    %29 = vector.shape_cast %28 : vector<64x1xi1> to vector<64x1xi1>
    %30 = vector.broadcast %29 : vector<64x1xi1> to vector<64x128xi1>
    %31 = vector.broadcast %cst_15 : f32 to vector<64x128xf32>
    %32 = arith.select %30, %22, %31 : vector<64x128xi1>, vector<64x128xf32>
    %33 = vector.shape_cast %32 : vector<64x128xf32> to vector<8x8x128xf32>
    %cst_16 = arith.constant dense<0.000000e+00> : vector<8x128xf32>
    %34 = vector.multi_reduction <add>, %33, %cst_16 [1] : vector<8x8x128xf32> to vector<8x128xf32>
    %c0_17 = arith.constant 0 : index
    %c0_18 = arith.constant 0 : index
    %35 = vector.load %arg6[%c0_17, %c0_18] : memref<8x128xf32, #tpu.memory_space<vmem>>, vector<8x128xf32>
    tpu.vector_store %arg6[%c0_17, %c0_18], %34 {strides = array<i32>} : memref<8x128xf32, #tpu.memory_space<vmem>>, vector<8x128xf32>,
    return
  }
  func.func @transform_0(%arg0: i32) -> (i32, i32) {
    %c0_i32 = arith.constant 0 : i32
    %c0_i32_0 = arith.constant 0 : i32
    return %arg0, %c0_i32 : i32, i32
  }
  func.func @transform_1(%arg0: i32) -> (i32, i32) {
    %c0_i32 = arith.constant 0 : i32
    %c0_i32_0 = arith.constant 0 : i32
    %c0_i32_1 = arith.constant 0 : i32
    return %c0_i32, %c0_i32_0 : i32, i32
  }
  func.func @transform_2(%arg0: i32) -> (i32, i32) {
    %c0_i32 = arith.constant 0 : i32
    %c0_i32_0 = arith.constant 0 : i32
    %c0_i32_1 = arith.constant 0 : i32
    return %c0_i32, %c0_i32_0 : i32, i32
  }
  func.func @transform_3(%arg0: i32) -> (i32, i32) {
    %c0_i32 = arith.constant 0 : i32
    %c0_i32_0 = arith.constant 0 : i32
    %c0_i32_1 = arith.constant 0 : i32
    return %c0_i32, %c0_i32_0 : i32, i32
  }
  func.func @transform_4(%arg0: i32) -> (i32, i32) {
    %c0_i32 = arith.constant 0 : i32
    %c0_i32_0 = arith.constant 0 : i32
    %c0_i32_1 = arith.constant 0 : i32
    return %c0_i32, %c0_i32_0 : i32, i32
  }
  func.func @transform_5(%arg0: i32) -> (i32, i32) {
    %c0_i32 = arith.constant 0 : i32
    %c0_i32_0 = arith.constant 0 : i32
    return %arg0, %c0_i32 : i32, i32
  }
}

</mosaic_0001>

<llo_original>
// kernel: tpu_custom_call.1
$region0: #{tpu_custom_call.1}
  #allocation0 [shape = 'u32[]', space=smem, size = 0x4, offset = 0x4, fixed_abs, tag = 'smem constant byte address 0x4 - core index']
  #allocation1 [shape = 'u32[72,128]{1,0:T(1,128)}', space=vmem, size = 0x9000, scoped, tag = 'internal scratch']
  %s0 = inlined_call_operand.vmem [shape: bf16[128,64], index: 0, kind: input, shape index: {}]
  %s1 = inlined_call_operand.vmem [shape: bf16[64,256], index: 1, kind: input, shape index: {}]
  %s2 = inlined_call_operand.vmem [shape: f32[1,256], index: 2, kind: input, shape index: {}]
  %s3 = inlined_call_operand.hbm [shape: bf16[256,256], index: 3, kind: input, shape index: {}]
  %s4 = inlined_call_operand.vmem [shape: f32[1,256], index: 4, kind: input, shape index: {}]
  %s5 = inlined_call_operand.hbm [shape: f32[16,128], index: 5, kind: output, shape index: {}]
  %s6 = sld [smem:[#allocation0]]
  $region57: #{tpu_custom_call.1} parent=0
    _
  %s8 = ssub.s32 1, %s6
  %s9 = scalar_select 0, %s8, %s6
  $region1: #{tpu_custom_call.1} parent=0
    #allocation2 [shape = 'u8[131072]{0}', space=vmem, size = 0x20000, scoped, tag = 'input window, operand 3, single buffered']
    #allocation3 [shape = 's32[2]{0}', space=sflag, size = 0x8, scoped, tag = 'scoped memory for tpu_custom_call.1']
    #allocation4 [shape = 's32[2]{0}', space=sflag, size = 0x8, scoped, tag = 'scoped memory for tpu_custom_call.1']
    #allocation5 [shape = 'u8[8192]{0}', space=vmem, size = 0x2000, scoped, tag = 'output window, operand 0']
    %10 = vsyncpa [#allocation3], 0
    %11 = vsyncpa [#allocation4], 0
    %s12 = scalar_lea.sflag [#allocation4], 1
    %13 = vsyncpa %s12, 0
    loop: start=0, step=1, limit=4
    $region2: #{tpu_custom_call.1} parent=1 // loop_pre_header
      _
    $region3: #{tpu_custom_call.1} parent=1 // loop_header
      %s15 = sphi 0, %s19
      %p16 = scmp.ge.s32.totalorder %s15, 4
      %s25 = sphi 0, %s27
      %s28 = sphi 0, %s25
      %s29 = sphi 0, %s28
      %s45 = sphi 0, %s29
      %s49 = sphi 0, %s49
      %s51 = sphi 0, %s49
      %s52 = sphi 0, %s51
      %s66 = sphi 0, %s52
      %s70 = sphi 0, %s70
      %s72 = sphi 0, %s70
      %s73 = sphi 0, %s72
      %s87 = sphi 0, %s73
      %s91 = sphi 0, %s91
      %s93 = sphi 0, %s91
      %s94 = sphi 0, %s93
      %s108 = sphi 0, %s94
      %s112 = sphi 0, %s112
      %s114 = sphi 0, %s112
      %s115 = sphi 0, %s114
      %s129 = sphi 0, %s115
      %s135 = sphi 0, %s137
      %s138 = sphi 0, %s135
      %s139 = sphi 0, %s138
      %s155 = sphi 0, %s139
    $region4: #{tpu_custom_call.1} parent=1 // loop_header_branch
      %18 = sbr.rel (%p16) target = $region8
    $region5: #{tpu_custom_call.1} parent=1 // loop_body
      %s20 = ssub.s32 %s15, 1
      %s21 = ssub.s32 %s15, 2
      %s22 = sadd.s32 %s15, 1
      %s23 = ssub.s32 %s15, %s22
      %p24 = scmp.eq.s32.totalorder %s23, 0
      %s26 = sadd.s32 %s25, 1
      %s27 = scalar_select %p24, %s25, %s26
      %p30 = pneg %p24
      %p31 = scmp.eq.s32.totalorder %s15, 1
      %p32 = por %p30, %p31
      %p33 = scmp.ne.s32.totalorder %s25, %s28
      %p34 = scmp.eq.s32.totalorder %s15, 0
      %p35 = por %p33, %p34
      %p36 = scmp.ne.s32.totalorder %s25, %s28
      %p37 = scmp.eq.s32.totalorder %s20, 1
      %p38 = por %p36, %p37
      %p39 = scmp.ne.s32.totalorder %s28, %s29
      %p40 = scmp.eq.s32.totalorder %s20, 0
      %p41 = por %p39, %p40
      %p42 = scmp.ne.s32.totalorder %s28, %s29
      %p43 = scmp.eq.s32.totalorder %s21, 1
      %p44 = por %p42, %p43
      %p46 = scmp.ne.s32.totalorder %s29, %s45
      %p47 = scmp.eq.s32.totalorder %s21, 0
      %p48 = por %p46, %p47
      %s50 = sadd.s32 %s49, 1
      %p53 = scmp.eq.s32.totalorder %s15, 1
      %p54 = scmp.ne.s32.totalorder %s49, %s51
      %p55 = scmp.eq.s32.totalorder %s15, 0
      %p56 = por %p54, %p55
      %p57 = scmp.ne.s32.totalorder %s49, %s51
      %p58 = scmp.eq.s32.totalorder %s20, 1
      %p59 = por %p57, %p58
      %p60 = scmp.ne.s32.totalorder %s51, %s52
      %p61 = scmp.eq.s32.totalorder %s20, 0
      %p62 = por %p60, %p61
      %p63 = scmp.ne.s32.totalorder %s51, %s52
      %p64 = scmp.eq.s32.totalorder %s21, 1
      %p65 = por %p63, %p64
      %p67 = scmp.ne.s32.totalorder %s52, %s66
      %p68 = scmp.eq.s32.totalorder %s21, 0
      %p69 = por %p67, %p68
      %s71 = sadd.s32 %s70, 1
      %p74 = scmp.eq.s32.totalorder %s15, 1
      %p75 = scmp.ne.s32.totalorder %s70, %s72
      %p76 = scmp.eq.s32.totalorder %s15, 0
      %p77 = por %p75, %p76
      %p78 = scmp.ne.s32.totalorder %s70, %s72
      %p79 = scmp.eq.s32.totalorder %s20, 1
      %p80 = por %p78, %p79
      %p81 = scmp.ne.s32.totalorder %s72, %s73
      %p82 = scmp.eq.s32.totalorder %s20, 0
      %p83 = por %p81, %p82
      %p84 = scmp.ne.s32.totalorder %s72, %s73
      %p85 = scmp.eq.s32.totalorder %s21, 1
      %p86 = por %p84, %p85
      %p88 = scmp.ne.s32.totalorder %s73, %s87
      %p89 = scmp.eq.s32.totalorder %s21, 0
      %p90 = por %p88, %p89
      %s92 = sadd.s32 %s91, 1
      %p95 = scmp.eq.s32.totalorder %s15, 1
      %p96 = scmp.ne.s32.totalorder %s91, %s93
      %p97 = scmp.eq.s32.totalorder %s15, 0
      %p98 = por %p96, %p97
      %p99 = scmp.ne.s32.totalorder %s91, %s93
      %p100 = scmp.eq.s32.totalorder %s20, 1
      %p101 = por %p99, %p100
      %p102 = scmp.ne.s32.totalorder %s93, %s94
      %p103 = scmp.eq.s32.totalorder %s20, 0
      %p104 = por %p102, %p103
      %p105 = scmp.ne.s32.totalorder %s93, %s94
      %p106 = scmp.eq.s32.totalorder %s21, 1
      %p107 = por %p105, %p106
      %p109 = scmp.ne.s32.totalorder %s94, %s108
      %p110 = scmp.eq.s32.totalorder %s21, 0
      %p111 = por %p109, %p110
      %s113 = sadd.s32 %s112, 1
      %p116 = scmp.eq.s32.totalorder %s15, 1
      %p117 = scmp.ne.s32.totalorder %s112, %s114
      %p118 = scmp.eq.s32.totalorder %s15, 0
      %p119 = por %p117, %p118
      %p120 = scmp.ne.s32.totalorder %s112, %s114
      %p121 = scmp.eq.s32.totalorder %s20, 1
      %p122 = por %p120, %p121
      %p123 = scmp.ne.s32.totalorder %s114, %s115
      %p124 = scmp.eq.s32.totalorder %s20, 0
      %p125 = por %p123, %p124
      %p126 = scmp.ne.s32.totalorder %s114, %s115
      %p127 = scmp.eq.s32.totalorder %s21, 1
      %p128 = por %p126, %p127
      %p130 = scmp.ne.s32.totalorder %s115, %s129
      %p131 = scmp.eq.s32.totalorder %s21, 0
      %p132 = por %p130, %p131
      %s133 = ssub.s32 %s15, %s22
      %p134 = scmp.eq.s32.totalorder %s133, 0
      %s136 = sadd.s32 %s135, 1
      %s137 = scalar_select %p134, %s135, %s136
      %p140 = pneg %p134
      %p141 = scmp.eq.s32.totalorder %s15, 1
      %p142 = por %p140, %p141
      %p143 = scmp.ne.s32.totalorder %s135, %s138
      %p144 = scmp.eq.s32.totalorder %s15, 0
      %p145 = por %p143, %p144
      %p146 = scmp.ne.s32.totalorder %s135, %s138
      %p147 = scmp.eq.s32.totalorder %s20, 1
      %p148 = por %p146, %p147
      %p149 = scmp.ne.s32.totalorder %s138, %s139
      %p150 = scmp.eq.s32.totalorder %s20, 0
      %p151 = por %p149, %p150
      %p152 = scmp.ne.s32.totalorder %s138, %s139
      %p153 = scmp.eq.s32.totalorder %s21, 1
      %p154 = por %p152, %p153
      %p156 = scmp.ne.s32.totalorder %s139, %s155
      %p157 = scmp.eq.s32.totalorder %s21, 0
      %p158 = por %p156, %p157
      %p159 = scmp.le.s32.totalorder 1, %s15
      %p160 = scmp.lt.s32.totalorder %s15, 3
      %p161 = pnand %p159, %p160
      %p162 = pneg %p161
      // Predicated region
      $region9: #{tpu_custom_call.1} parent=5 // pred_check
        _
      $region10: #{tpu_custom_call.1} parent=5 // pred_check_branch
        %164 = sbr.rel (%p161) target = $region12
      $region11: #{tpu_custom_call.1} parent=5 // pred_region
        %s165 = ssub.s32 %s15, 1
        // Predicated region
        $region13: #{tpu_custom_call.1} parent=11 // pred_check
          %p166 = pneg %p62
        $region14: #{tpu_custom_call.1} parent=11 // pred_check_branch
          %168 = sbr.rel (%p166) target = $region16
        $region15: #{tpu_custom_call.1} parent=11 // pred_region
          _
        $region16: #{tpu_custom_call.1} parent=11 // pred_fallthru
          _
        // Predicated region
        $region17: #{tpu_custom_call.1} parent=11 // pred_check
          %p169 = pneg %p83
        $region18: #{tpu_custom_call.1} parent=11 // pred_check_branch
          %171 = sbr.rel (%p169) target = $region20
        $region19: #{tpu_custom_call.1} parent=11 // pred_region
          _
        $region20: #{tpu_custom_call.1} parent=11 // pred_fallthru
          _
        // Predicated region
        $region21: #{tpu_custom_call.1} parent=11 // pred_check
          %p172 = pneg %p104
        $region22: #{tpu_custom_call.1} parent=11 // pred_check_branch
          %174 = sbr.rel (%p172) target = $region24
        $region23: #{tpu_custom_call.1} parent=11 // pred_region
          %176 = vsyncadd [#allocation3], 0
          %s177 = sshll.u32 %s3, 4
          %s178 = int_to_ptr.hbm [resolvable:$true] %s177
          %s179 = sshll.u32 [#allocation2], 4
          %s180 = int_to_ptr.vmem [resolvable:$true] %s179
          %185 = dma.hbm_to_vmem [thread:$0]  %s178, 4096, %s180, [#allocation3], 128, 128, 8
        $region24: #{tpu_custom_call.1} parent=11 // pred_fallthru
          _
        // Predicated region
        $region25: #{tpu_custom_call.1} parent=11 // pred_check
          %p186 = pneg %p125
        $region26: #{tpu_custom_call.1} parent=11 // pred_check_branch
          %188 = sbr.rel (%p186) target = $region28
        $region27: #{tpu_custom_call.1} parent=11 // pred_region
          _
        $region28: #{tpu_custom_call.1} parent=11 // pred_fallthru
          _
      $region12: #{tpu_custom_call.1} parent=5 // pred_fallthru
        _
      %p189 = scmp.lt.s32.totalorder %s15, 2
      // Predicated region
      $region29: #{tpu_custom_call.1} parent=5 // pred_check
        %p190 = pneg %p189
      $region30: #{tpu_custom_call.1} parent=5 // pred_check_branch
        %192 = sbr.rel (%p190) target = $region32
      $region31: #{tpu_custom_call.1} parent=5 // pred_region
        // Predicated region
        $region33: #{tpu_custom_call.1} parent=31 // pred_check
          %p193 = pneg %p35
        $region34: #{tpu_custom_call.1} parent=31 // pred_check_branch
          %195 = sbr.rel (%p193) target = $region36
        $region35: #{tpu_custom_call.1} parent=31 // pred_region
          %s196 = smul.u32 8, %s15
          %p197 = scmp.lt.s32.totalorder %s196, 15
          %s198 = scalar_select %p197, %s196, 15
          %s199 = smul.addr %s198, 4
          %s200 = scalar_lea.vmem %s0, %s199
          %s201 = smul.u32 8, %s15
        $region36: #{tpu_custom_call.1} parent=31 // pred_fallthru
          _
      $region32: #{tpu_custom_call.1} parent=5 // pred_fallthru
        _
      %p202 = scmp.le.s32.totalorder 1, %s15
      %p203 = scmp.lt.s32.totalorder %s15, 3
      %p204 = pnand %p202, %p203
      %p205 = pneg %p204
      // Predicated region
      $region37: #{tpu_custom_call.1} parent=5 // pred_check
        _
      $region38: #{tpu_custom_call.1} parent=5 // pred_check_branch
        %207 = sbr.rel (%p204) target = $region40
      $region39: #{tpu_custom_call.1} parent=5 // pred_region
        %s208 = ssub.s32 %s15, 1
        // Predicated region
        $region41: #{tpu_custom_call.1} parent=39 // pred_check
          %p209 = pneg %p104
        $region42: #{tpu_custom_call.1} parent=39 // pred_check_branch
          %211 = sbr.rel (%p209) target = $region44
        $region43: #{tpu_custom_call.1} parent=39 // pred_region
          %213 = dma.done [#allocation3], 4096
        $region44: #{tpu_custom_call.1} parent=39 // pred_fallthru
          _
        %s214 = smul.u32 8, %s20
        %p215 = scmp.lt.s32.totalorder %s214, 15
        %s216 = scalar_select %p215, %s214, 15
        %s217 = smul.addr %s216, 4
        %s218 = scalar_lea.vmem %s0, %s217
        %p219 = pneg %p41
        %p220 = pneg %p38
        %p221 = pneg %p62
        %p222 = pneg %p59
        %p223 = pneg %p83
        %p224 = pneg %p80
        %p225 = pneg %p104
        %p226 = pneg %p101
        %p227 = pneg %p125
        %p228 = pneg %p122
        %p229 = pneg %p151
        %p230 = pneg %p148
        %s231 = sand.u32 %s138, 1
        %s232 = scalar_lea.sflag [#allocation4], %s231
        %s233 = sand.u32 %s138, 1
        %s234 = smul.addr %s233, 8
        %s235 = scalar_lea.vmem [#allocation5], %s234
        %s236 = smul.u32 8, %s20
        %p237 = scmp.lt.s32.totalorder %s236, 15
        %s238 = scalar_select %p237, %s236, 15
        %s239 = smul.addr %s238, 4
        %s240 = scalar_lea.vmem %s0, %s239
        %s241 = smul.u32 8, %s20
        %v243 = vld [vmem:[%s240] sm:$0xf]
        %v244 = vld [vmem:[%s240 + $0x4] sm:$0xf]
        %v245 = vld [vmem:[%s240 + $0x8] sm:$0xf]
        %v246 = vld [vmem:[%s240 + $0xc] sm:$0xf]
        %v247 = vld [vmem:[%s240 + $0x10] sm:$0xf]
        %v248 = vld [vmem:[%s240 + $0x14] sm:$0xf]
        %v249 = vld [vmem:[%s240 + $0x18] sm:$0xf]
        %v250 = vld [vmem:[%s240 + $0x1c] sm:$0xf]
        %v251 = vld [vmem:[%s1] sm:$0xff]
        %v252 = vld [vmem:[%s1 + $0x8] sm:$0xff]
        %v253 = vld [vmem:[%s1 + $0x10] sm:$0xff]
        %v254 = vld [vmem:[%s1 + $0x18] sm:$0xff]
        %v255 = vld [vmem:[%s1 + $0x20] sm:$0xff]
        %v256 = vld [vmem:[%s1 + $0x28] sm:$0xff]
        %v257 = vld [vmem:[%s1 + $0x30] sm:$0xff]
        %v258 = vld [vmem:[%s1 + $0x38] sm:$0xff]
        %v259 = vld [vmem:[%s2] sm:$0x3]
        %v261 = vperm.slane %v259, 0
        %v262 = vperm.slane %v259, 1
        %v273 = vunpack.c.l.b16 %v243
        %v274 = vunpack.c.l.b16 %v244
        %v275 = vunpack.c.l.b16 %v245
        %v276 = vunpack.c.l.b16 %v246
        %v277 = vunpack.c.l.b16 %v247
        %v278 = vunpack.c.l.b16 %v248
        %v279 = vunpack.c.l.b16 %v249
        %v280 = vunpack.c.l.b16 %v250
        %v281 = vpack.c.b16 %v274, %v273
        %v282 = vpack.c.b16 %v276, %v275
        %v283 = vpack.c.b16 %v278, %v277
        %v284 = vpack.c.b16 %v280, %v279
        %v293 = vunpack.c.l.b16 %v251
        %v294 = vunpack.c.h.b16 %v251
        %v295 = vunpack.c.l.b16 %v252
        %v296 = vunpack.c.h.b16 %v252
        %v297 = vunpack.c.l.b16 %v253
        %v298 = vunpack.c.h.b16 %v253
        %v299 = vunpack.c.l.b16 %v254
        %v300 = vunpack.c.h.b16 %v254
        %v301 = vunpack.c.l.b16 %v255
        %v302 = vunpack.c.h.b16 %v255
        %v303 = vunpack.c.l.b16 %v256
        %v304 = vunpack.c.h.b16 %v256
        %v305 = vunpack.c.l.b16 %v257
        %v306 = vunpack.c.h.b16 %v257
        %v307 = vunpack.c.l.b16 %v258
        %v308 = vunpack.c.h.b16 %v258
        %v309 = vpack.c.b16 %v295, %v293
        %v310 = vpack.c.b16 %v296, %v294
        %v311 = vpack.c.b16 %v299, %v297
        %v312 = vpack.c.b16 %v300, %v298
        %v313 = vpack.c.b16 %v303, %v301
        %v314 = vpack.c.b16 %v304, %v302
        %v315 = vpack.c.b16 %v307, %v305
        %v316 = vpack.c.b16 %v308, %v306
        %vm325 = vcmask 523264
        %v327 = vsel %vm325, %v281, 0
        %v330 = vsel %vm325, %v282, 0
        %v333 = vsel %vm325, %v283, 0
        %v336 = vsel %vm325, %v284, 0
        %338 = vmatpush.bf16.msra.mxu0 0
        %339 = vmatpush.bf16.msra.mxu0 0
        %340 = vmatpush.bf16.msra.mxu0 0
        %341 = vmatpush.bf16.msra.mxu0 0
        %342 = vmatpush.bf16.msra.mxu0 %v315
        %343 = vmatpush.bf16.msra.mxu0 %v313
        %344 = vmatpush.bf16.msra.mxu0 %v311
        %345 = vmatpush.bf16.msra.mxu0 %v309
        %346 = vmatmul.bf16.gmra.mxu0 %v327
        %v347 = vpop.f32.mrf.mxu0
        %v348 = vadd.f32 %v261, %v347
        %v349 = vpop.f32.mrf.mxu0
        %v350 = vadd.f32 %v261, %v349
        %351 = vmatmul.bf16.gmra.mxu0 %v330
        %v352 = vpop.f32.mrf.mxu0
        %v353 = vadd.f32 %v261, %v352
        %v354 = vpop.f32.mrf.mxu0
        %v355 = vadd.f32 %v261, %v354
        %356 = vmatmul.bf16.gmra.mxu0 %v333
        %v357 = vpop.f32.mrf.mxu0
        %v358 = vadd.f32 %v261, %v357
        %v359 = vpop.f32.mrf.mxu0
        %v360 = vadd.f32 %v261, %v359
        %361 = vmatmul.bf16.gmra.mxu0 %v336
        %v362 = vpop.f32.mrf.mxu0
        %v363 = vadd.f32 %v261, %v362
        %v364 = vpop.f32.mrf.mxu0
        %v365 = vadd.f32 %v261, %v364
        %366 = vdwg.mxu0
        %367 = vmatpush.bf16.msra.mxu0 0
        %368 = vmatpush.bf16.msra.mxu0 0
        %369 = vmatpush.bf16.msra.mxu0 0
        %370 = vmatpush.bf16.msra.mxu0 0
        %371 = vmatpush.bf16.msra.mxu0 %v316
        %372 = vmatpush.bf16.msra.mxu0 %v314
        %373 = vmatpush.bf16.msra.mxu0 %v312
        %374 = vmatpush.bf16.msra.mxu0 %v310
        %375 = vmatmul.bf16.gmra.mxu0 %v327
        %v376 = vpop.f32.mrf.mxu0
        %v377 = vadd.f32 %v262, %v376
        %v378 = vpop.f32.mrf.mxu0
        %v379 = vadd.f32 %v262, %v378
        %380 = vmatmul.bf16.gmra.mxu0 %v330
        %v381 = vpop.f32.mrf.mxu0
        %v382 = vadd.f32 %v262, %v381
        %v383 = vpop.f32.mrf.mxu0
        %v384 = vadd.f32 %v262, %v383
        %385 = vmatmul.bf16.gmra.mxu0 %v333
        %v386 = vpop.f32.mrf.mxu0
        %v387 = vadd.f32 %v262, %v386
        %v388 = vpop.f32.mrf.mxu0
        %v389 = vadd.f32 %v262, %v388
        %390 = vmatmul.bf16.gmra.mxu0 %v336
        %v391 = vpop.f32.mrf.mxu0
        %v392 = vadd.f32 %v262, %v391
        %v393 = vpop.f32.mrf.mxu0
        %v394 = vadd.f32 %v262, %v393
        %395 = vdwg.mxu0
        %v396 = vmax.f32 %v348, 0.0
        %v397 = vmax.f32 %v377, 0.0
        %v398 = vmax.f32 %v350, 0.0
        %v399 = vmax.f32 %v379, 0.0
        %v400 = vmax.f32 %v353, 0.0
        %v401 = vmax.f32 %v382, 0.0
        %v402 = vmax.f32 %v355, 0.0
        %v403 = vmax.f32 %v384, 0.0
        %v404 = vmax.f32 %v358, 0.0
        %v405 = vmax.f32 %v387, 0.0
        %v406 = vmax.f32 %v360, 0.0
        %v407 = vmax.f32 %v389, 0.0
        %v408 = vmax.f32 %v363, 0.0
        %v409 = vmax.f32 %v392, 0.0
        %v410 = vmax.f32 %v365, 0.0
        %v411 = vmax.f32 %v394, 0.0
        %v412 = vpack.c.bf16 %v398, %v396
        %v413 = vpack.c.bf16 %v399, %v397
        %v414 = vpack.c.bf16 %v402, %v400
        %v415 = vpack.c.bf16 %v403, %v401
        %v416 = vpack.c.bf16 %v406, %v404
        %v417 = vpack.c.bf16 %v407, %v405
        %v418 = vpack.c.bf16 %v410, %v408
        %v419 = vpack.c.bf16 %v411, %v409
        %v420 = vld [vmem:[%s4] sm:$0x3]
        %v421 = vld [vmem:[#allocation2] sm:$0xff]
        %v422 = vld [vmem:[#allocation2 + $0x8] sm:$0xff]
        %v423 = vld [vmem:[#allocation2 + $0x10] sm:$0xff]
        %v424 = vld [vmem:[#allocation2 + $0x18] sm:$0xff]
        %v425 = vld [vmem:[#allocation2 + $0x20] sm:$0xff]
        %v426 = vld [vmem:[#allocation2 + $0x28] sm:$0xff]
        %v427 = vld [vmem:[#allocation2 + $0x30] sm:$0xff]
        %v428 = vld [vmem:[#allocation2 + $0x38] sm:$0xff]
        %v429 = vld [vmem:[#allocation2 + $0x40] sm:$0xff]
        %v430 = vld [vmem:[#allocation2 + $0x48] sm:$0xff]
        %v431 = vld [vmem:[#allocation2 + $0x50] sm:$0xff]
        %v432 = vld [vmem:[#allocation2 + $0x58] sm:$0xff]
        %v433 = vld [vmem:[#allocation2 + $0x60] sm:$0xff]
        %v434 = vld [vmem:[#allocation2 + $0x68] sm:$0xff]
        %v435 = vld [vmem:[#allocation2 + $0x70] sm:$0xff]
        %v436 = vld [vmem:[#allocation2 + $0x78] sm:$0xff]
        %v437 = vld [vmem:[#allocation2 + $0x80] sm:$0xff]
        %v438 = vld [vmem:[#allocation2 + $0x88] sm:$0xff]
        %v439 = vld [vmem:[#allocation2 + $0x90] sm:$0xff]
        %v440 = vld [vmem:[#allocation2 + $0x98] sm:$0xff]
        %v441 = vld [vmem:[#allocation2 + $0xa0] sm:$0xff]
        %v442 = vld [vmem:[#allocation2 + $0xa8] sm:$0xff]
        %v443 = vld [vmem:[#allocation2 + $0xb0] sm:$0xff]
        %v444 = vld [vmem:[#allocation2 + $0xb8] sm:$0xff]
        %v445 = vld [vmem:[#allocation2 + $0xc0] sm:$0xff]
        %v446 = vld [vmem:[#allocation2 + $0xc8] sm:$0xff]
        %v447 = vld [vmem:[#allocation2 + $0xd0] sm:$0xff]
        %v448 = vld [vmem:[#allocation2 + $0xd8] sm:$0xff]
        %v449 = vld [vmem:[#allocation2 + $0xe0] sm:$0xff]
        %v450 = vld [vmem:[#allocation2 + $0xe8] sm:$0xff]
        %v451 = vld [vmem:[#allocation2 + $0xf0] sm:$0xff]
        %v452 = vld [vmem:[#allocation2 + $0xf8] sm:$0xff]
        %v454 = vperm.slane %v420, 0
        %v455 = vperm.slane %v420, 1
        %v490 = vunpack.c.l.b16 %v421
        %v491 = vunpack.c.h.b16 %v421
        %v492 = vunpack.c.l.b16 %v422
        %v493 = vunpack.c.h.b16 %v422
        %v494 = vunpack.c.l.b16 %v423
        %v495 = vunpack.c.h.b16 %v423
        %v496 = vunpack.c.l.b16 %v424
        %v497 = vunpack.c.h.b16 %v424
        %v498 = vunpack.c.l.b16 %v425
        %v499 = vunpack.c.h.b16 %v425
        %v500 = vunpack.c.l.b16 %v426
        %v501 = vunpack.c.h.b16 %v426
        %v502 = vunpack.c.l.b16 %v427
        %v503 = vunpack.c.h.b16 %v427
        %v504 = vunpack.c.l.b16 %v428
        %v505 = vunpack.c.h.b16 %v428
        %v506 = vunpack.c.l.b16 %v429
        %v507 = vunpack.c.h.b16 %v429
        %v508 = vunpack.c.l.b16 %v430
        %v509 = vunpack.c.h.b16 %v430
        %v510 = vunpack.c.l.b16 %v431
        %v511 = vunpack.c.h.b16 %v431
        %v512 = vunpack.c.l.b16 %v432
        %v513 = vunpack.c.h.b16 %v432
        %v514 = vunpack.c.l.b16 %v433
        %v515 = vunpack.c.h.b16 %v433
        %v516 = vunpack.c.l.b16 %v434
        %v517 = vunpack.c.h.b16 %v434
        %v518 = vunpack.c.l.b16 %v435
        %v519 = vunpack.c.h.b16 %v435
        %v520 = vunpack.c.l.b16 %v436
        %v521 = vunpack.c.h.b16 %v436
        %v522 = vunpack.c.l.b16 %v437
        %v523 = vunpack.c.h.b16 %v437
        %v524 = vunpack.c.l.b16 %v438
        %v525 = vunpack.c.h.b16 %v438
        %v526 = vunpack.c.l.b16 %v439
        %v527 = vunpack.c.h.b16 %v439
        %v528 = vunpack.c.l.b16 %v440
        %v529 = vunpack.c.h.b16 %v440
        %v530 = vunpack.c.l.b16 %v441
        %v531 = vunpack.c.h.b16 %v441
        %v532 = vunpack.c.l.b16 %v442
        %v533 = vunpack.c.h.b16 %v442
        %v534 = vunpack.c.l.b16 %v443
        %v535 = vunpack.c.h.b16 %v443
        %v536 = vunpack.c.l.b16 %v444
        %v537 = vunpack.c.h.b16 %v444
        %v538 = vunpack.c.l.b16 %v445
        %v539 = vunpack.c.h.b16 %v445
        %v540 = vunpack.c.l.b16 %v446
        %v541 = vunpack.c.h.b16 %v446
        %v542 = vunpack.c.l.b16 %v447
        %v543 = vunpack.c.h.b16 %v447
        %v544 = vunpack.c.l.b16 %v448
        %v545 = vunpack.c.h.b16 %v448
        %v546 = vunpack.c.l.b16 %v449
        %v547 = vunpack.c.h.b16 %v449
        %v548 = vunpack.c.l.b16 %v450
        %v549 = vunpack.c.h.b16 %v450
        %v550 = vunpack.c.l.b16 %v451
        %v551 = vunpack.c.h.b16 %v451
        %v552 = vunpack.c.l.b16 %v452
        %v553 = vunpack.c.h.b16 %v452
        %v554 = vpack.c.b16 %v492, %v490
        %v555 = vpack.c.b16 %v493, %v491
        %v556 = vpack.c.b16 %v496, %v494
        %v557 = vpack.c.b16 %v497, %v495
        %v558 = vpack.c.b16 %v500, %v498
        %v559 = vpack.c.b16 %v501, %v499
        %v560 = vpack.c.b16 %v504, %v502
        %v561 = vpack.c.b16 %v505, %v503
        %v562 = vpack.c.b16 %v508, %v506
        %v563 = vpack.c.b16 %v509, %v507
        %v564 = vpack.c.b16 %v512, %v510
        %v565 = vpack.c.b16 %v513, %v511
        %v566 = vpack.c.b16 %v516, %v514
        %v567 = vpack.c.b16 %v517, %v515
        %v568 = vpack.c.b16 %v520, %v518
        %v569 = vpack.c.b16 %v521, %v519
        %v570 = vpack.c.b16 %v524, %v522
        %v571 = vpack.c.b16 %v525, %v523
        %v572 = vpack.c.b16 %v528, %v526
        %v573 = vpack.c.b16 %v529, %v527
        %v574 = vpack.c.b16 %v532, %v530
        %v575 = vpack.c.b16 %v533, %v531
        %v576 = vpack.c.b16 %v536, %v534
        %v577 = vpack.c.b16 %v537, %v535
        %v578 = vpack.c.b16 %v540, %v538
        %v579 = vpack.c.b16 %v541, %v539
        %v580 = vpack.c.b16 %v544, %v542
        %v581 = vpack.c.b16 %v545, %v543
        %v582 = vpack.c.b16 %v548, %v546
        %v583 = vpack.c.b16 %v549, %v547
        %v584 = vpack.c.b16 %v552, %v550
        %v585 = vpack.c.b16 %v553, %v551
        %618 = vmatpush.bf16.msra.mxu0 %v568
        %619 = vmatpush.bf16.msra.mxu0 %v566
        %620 = vmatpush.bf16.msra.mxu0 %v564
        %621 = vmatpush.bf16.msra.mxu0 %v562
        %622 = vmatpush.bf16.msra.mxu0 %v560
        %623 = vmatpush.bf16.msra.mxu0 %v558
        %624 = vmatpush.bf16.msra.mxu0 %v556
        %625 = vmatpush.bf16.msra.mxu0 %v554
        %626 = vmatmul.bf16.gmra.mxu0 %v412
        %v627 = vpop.f32.mrf.mxu0
        %v628 = vadd.f32 %v454, %v627
        %v629 = vpop.f32.mrf.mxu0
        %v630 = vadd.f32 %v454, %v629
        %631 = vmatmul.bf16.gmra.mxu0 %v414
        %v632 = vpop.f32.mrf.mxu0
        %v633 = vadd.f32 %v454, %v632
        %v634 = vpop.f32.mrf.mxu0
        %v635 = vadd.f32 %v454, %v634
        %636 = vmatmul.bf16.gmra.mxu0 %v416
        %v637 = vpop.f32.mrf.mxu0
        %v638 = vadd.f32 %v454, %v637
        %v639 = vpop.f32.mrf.mxu0
        %v640 = vadd.f32 %v454, %v639
        %641 = vmatmul.bf16.gmra.mxu0 %v418
        %v642 = vpop.f32.mrf.mxu0
        %v643 = vadd.f32 %v454, %v642
        %v644 = vpop.f32.mrf.mxu0
        %v645 = vadd.f32 %v454, %v644
        %646 = vdwg.mxu0
        %647 = vmatpush.bf16.msra.mxu0 %v584
        %648 = vmatpush.bf16.msra.mxu0 %v582
        %649 = vmatpush.bf16.msra.mxu0 %v580
        %650 = vmatpush.bf16.msra.mxu0 %v578
        %651 = vmatpush.bf16.msra.mxu0 %v576
        %652 = vmatpush.bf16.msra.mxu0 %v574
        %653 = vmatpush.bf16.msra.mxu0 %v572
        %654 = vmatpush.bf16.msra.mxu0 %v570
        %655 = vmatmul.bf16.gmra.mxu0 %v413
        %v656 = vpop.f32.mrf.mxu0
        %v657 = vadd.f32 %v628, %v656
        %v658 = vpop.f32.mrf.mxu0
        %v659 = vadd.f32 %v630, %v658
        %660 = vmatmul.bf16.gmra.mxu0 %v415
        %v661 = vpop.f32.mrf.mxu0
        %v662 = vadd.f32 %v633, %v661
        %v663 = vpop.f32.mrf.mxu0
        %v664 = vadd.f32 %v635, %v663
        %665 = vmatmul.bf16.gmra.mxu0 %v417
        %v666 = vpop.f32.mrf.mxu0
        %v667 = vadd.f32 %v638, %v666
        %v668 = vpop.f32.mrf.mxu0
        %v669 = vadd.f32 %v640, %v668
        %670 = vmatmul.bf16.gmra.mxu0 %v419
        %v671 = vpop.f32.mrf.mxu0
        %v672 = vadd.f32 %v643, %v671
        %v673 = vpop.f32.mrf.mxu0
        %v674 = vadd.f32 %v645, %v673
        %675 = vdwg.mxu0
        %676 = vmatpush.bf16.msra.mxu0 %v569
        %677 = vmatpush.bf16.msra.mxu0 %v567
        %678 = vmatpush.bf16.msra.mxu0 %v565
        %679 = vmatpush.bf16.msra.mxu0 %v563
        %680 = vmatpush.bf16.msra.mxu0 %v561
        %681 = vmatpush.bf16.msra.mxu0 %v559
        %682 = vmatpush.bf16.msra.mxu0 %v557
        %683 = vmatpush.bf16.msra.mxu0 %v555
        %684 = vmatmul.bf16.gmra.mxu0 %v412
        %v685 = vpop.f32.mrf.mxu0
        %v686 = vadd.f32 %v455, %v685
        %v687 = vpop.f32.mrf.mxu0
        %v688 = vadd.f32 %v455, %v687
        %689 = vmatmul.bf16.gmra.mxu0 %v414
        %v690 = vpop.f32.mrf.mxu0
        %v691 = vadd.f32 %v455, %v690
        %v692 = vpop.f32.mrf.mxu0
        %v693 = vadd.f32 %v455, %v692
        %694 = vmatmul.bf16.gmra.mxu0 %v416
        %v695 = vpop.f32.mrf.mxu0
        %v696 = vadd.f32 %v455, %v695
        %v697 = vpop.f32.mrf.mxu0
        %v698 = vadd.f32 %v455, %v697
        %699 = vmatmul.bf16.gmra.mxu0 %v418
        %v700 = vpop.f32.mrf.mxu0
        %v701 = vadd.f32 %v455, %v700
        %v702 = vpop.f32.mrf.mxu0
        %v703 = vadd.f32 %v455, %v702
        %704 = vdwg.mxu0
        %705 = vmatpush.bf16.msra.mxu0 %v585
        %706 = vmatpush.bf16.msra.mxu0 %v583
        %707 = vmatpush.bf16.msra.mxu0 %v581
        %708 = vmatpush.bf16.msra.mxu0 %v579
        %709 = vmatpush.bf16.msra.mxu0 %v577
        %710 = vmatpush.bf16.msra.mxu0 %v575
        %711 = vmatpush.bf16.msra.mxu0 %v573
        %712 = vmatpush.bf16.msra.mxu0 %v571
        %713 = vmatmul.bf16.gmra.mxu0 %v413
        %v714 = vpop.f32.mrf.mxu0
        %v715 = vadd.f32 %v686, %v714
        %v716 = vpop.f32.mrf.mxu0
        %v717 = vadd.f32 %v688, %v716
        %718 = vmatmul.bf16.gmra.mxu0 %v415
        %v719 = vpop.f32.mrf.mxu0
        %v720 = vadd.f32 %v691, %v719
        %v721 = vpop.f32.mrf.mxu0
        %v722 = vadd.f32 %v693, %v721
        %723 = vmatmul.bf16.gmra.mxu0 %v417
        %v724 = vpop.f32.mrf.mxu0
        %v725 = vadd.f32 %v696, %v724
        %v726 = vpop.f32.mrf.mxu0
        %v727 = vadd.f32 %v698, %v726
        %728 = vmatmul.bf16.gmra.mxu0 %v419
        %v729 = vpop.f32.mrf.mxu0
        %v730 = vadd.f32 %v701, %v729
        %v731 = vpop.f32.mrf.mxu0
        %v732 = vadd.f32 %v703, %v731
        %733 = vdwg.mxu0
        %v734 = vsub.f32 0.0, %v657
        %v735 = vsub.f32 0.0, %v659
        %v736 = vsub.f32 0.0, %v662
        %v737 = vsub.f32 0.0, %v664
        %v738 = vsub.f32 0.0, %v667
        %v739 = vsub.f32 0.0, %v669
        %v740 = vsub.f32 0.0, %v672
        %v741 = vsub.f32 0.0, %v674
        %v742 = vmul.f32 %v734, 1.442695
        %v743 = vpow.pop %v742
        %v744 = vmul.f32 %v735, 1.442695
        %v745 = vpow.pop %v744
        %v746 = vmul.f32 %v736, 1.442695
        %v747 = vpow.pop %v746
        %v748 = vmul.f32 %v737, 1.442695
        %v749 = vpow.pop %v748
        %v750 = vmul.f32 %v738, 1.442695
        %v751 = vpow.pop %v750
        %v752 = vmul.f32 %v739, 1.442695
        %v753 = vpow.pop %v752
        %v754 = vmul.f32 %v740, 1.442695
        %v755 = vpow.pop %v754
        %v756 = vmul.f32 %v741, 1.442695
        %v757 = vpow.pop %v756
        %v758 = vadd.f32 %v743, 1.0
        %v759 = vadd.f32 %v745, 1.0
        %v760 = vadd.f32 %v747, 1.0
        %v761 = vadd.f32 %v749, 1.0
        %v762 = vadd.f32 %v751, 1.0
        %v763 = vadd.f32 %v753, 1.0
        %v764 = vadd.f32 %v755, 1.0
        %v765 = vadd.f32 %v757, 1.0
        %v766 = vrcp.pop %v758
        %v767 = vrcp.pop %v759
        %v768 = vrcp.pop %v760
        %v769 = vrcp.pop %v761
        %v770 = vrcp.pop %v762
        %v771 = vrcp.pop %v763
        %v772 = vrcp.pop %v764
        %v773 = vrcp.pop %v765
        %v774 = vmul.f32 %v766, %v715
        %v775 = vmul.f32 %v767, %v717
        %v776 = vmul.f32 %v768, %v720
        %v777 = vmul.f32 %v769, %v722
        %v778 = vmul.f32 %v770, %v725
        %v779 = vmul.f32 %v771, %v727
        %v780 = vmul.f32 %v772, %v730
        %v781 = vmul.f32 %v773, %v732
        %v782 = vunpack.c.l.bf16 %v243
        %v783 = vunpack.c.l.bf16 %v244
        %v784 = vunpack.c.l.bf16 %v245
        %v785 = vunpack.c.l.bf16 %v246
        %v786 = vunpack.c.l.bf16 %v247
        %v787 = vunpack.c.l.bf16 %v248
        %v788 = vunpack.c.l.bf16 %v249
        %v789 = vunpack.c.l.bf16 %v250
        %vm790 = vcmask 261120
        %v791 = vsel %vm790, %v782, 0.0
        %792 = vadd.xlane.f32.xlu0 %v791
        %v793 = vpop.xlane.xlu0 %792
        %v794 = vsel %vm790, %v783, 0.0
        %795 = vadd.xlane.f32.xlu0 %v794
        %v796 = vpop.xlane.xlu0 %795
        %v797 = vsel %vm790, %v784, 0.0
        %798 = vadd.xlane.f32.xlu0 %v797
        %v799 = vpop.xlane.xlu0 %798
        %v800 = vsel %vm790, %v785, 0.0
        %801 = vadd.xlane.f32.xlu0 %v800
        %v802 = vpop.xlane.xlu0 %801
        %v803 = vsel %vm790, %v786, 0.0
        %804 = vadd.xlane.f32.xlu0 %v803
        %v805 = vpop.xlane.xlu0 %804
        %v806 = vsel %vm790, %v787, 0.0
        %807 = vadd.xlane.f32.xlu0 %v806
        %v808 = vpop.xlane.xlu0 %807
        %v809 = vsel %vm790, %v788, 0.0
        %810 = vadd.xlane.f32.xlu0 %v809
        %v811 = vpop.xlane.xlu0 %810
        %v812 = vsel %vm790, %v789, 0.0
        %813 = vadd.xlane.f32.xlu0 %v812
        %v814 = vpop.xlane.xlu0 %813
        %vm815 = vcmp.gt.f32.partialorder %v793, 0.0
        %vm816 = vcmp.gt.f32.partialorder %v796, 0.0
        %vm817 = vcmp.gt.f32.partialorder %v799, 0.0
        %vm818 = vcmp.gt.f32.partialorder %v802, 0.0
        %vm819 = vcmp.gt.f32.partialorder %v805, 0.0
        %vm820 = vcmp.gt.f32.partialorder %v808, 0.0
        %vm821 = vcmp.gt.f32.partialorder %v811, 0.0
        %vm822 = vcmp.gt.f32.partialorder %v814, 0.0
        %v823 = vsel %vm815, 1, 0
        %v824 = vsel %vm816, 1, 0
        %v825 = vsel %vm817, 1, 0
        %v826 = vsel %vm818, 1, 0
        %v827 = vsel %vm819, 1, 0
        %v828 = vsel %vm820, 1, 0
        %v829 = vsel %vm821, 1, 0
        %v830 = vsel %vm822, 1, 0
        %vm831 = vcmp.eq.s32.totalorder %v823, 1
        %vm832 = vcmp.eq.s32.totalorder %v824, 1
        %vm833 = vcmp.eq.s32.totalorder %v825, 1
        %vm834 = vcmp.eq.s32.totalorder %v826, 1
        %vm835 = vcmp.eq.s32.totalorder %v827, 1
        %vm836 = vcmp.eq.s32.totalorder %v828, 1
        %vm837 = vcmp.eq.s32.totalorder %v829, 1
        %vm838 = vcmp.eq.s32.totalorder %v830, 1
        %v839 = vsel %vm831, %v774, 0.0
        %v840 = vsel %vm832, %v775, 0.0
        %v841 = vsel %vm833, %v776, 0.0
        %v842 = vsel %vm834, %v777, 0.0
        %v843 = vsel %vm835, %v778, 0.0
        %v844 = vsel %vm836, %v779, 0.0
        %v845 = vsel %vm837, %v780, 0.0
        %v846 = vsel %vm838, %v781, 0.0
        %v847 = vrot.slane %v839, 4
        %v848 = vadd.f32 %v839, %v847
        %v849 = vrot.slane %v848, 2
        %v850 = vadd.f32 %v848, %v849
        %v851 = vrot.slane %v850, 1
        %v852 = vadd.f32 %v850, %v851
        %v853 = vrot.slane %v840, 4
        %v854 = vadd.f32 %v840, %v853
        %v855 = vrot.slane %v854, 2
        %v856 = vadd.f32 %v854, %v855
        %v857 = vrot.slane %v856, 1
        %v858 = vadd.f32 %v856, %v857
        %v859 = vrot.slane %v841, 4
        %v860 = vadd.f32 %v841, %v859
        %v861 = vrot.slane %v860, 2
        %v862 = vadd.f32 %v860, %v861
        %v863 = vrot.slane %v862, 1
        %v864 = vadd.f32 %v862, %v863
        %v865 = vrot.slane %v842, 4
        %v866 = vadd.f32 %v842, %v865
        %v867 = vrot.slane %v866, 2
        %v868 = vadd.f32 %v866, %v867
        %v869 = vrot.slane %v868, 1
        %v870 = vadd.f32 %v868, %v869
        %v871 = vrot.slane %v843, 4
        %v872 = vadd.f32 %v843, %v871
        %v873 = vrot.slane %v872, 2
        %v874 = vadd.f32 %v872, %v873
        %v875 = vrot.slane %v874, 1
        %v876 = vadd.f32 %v874, %v875
        %v877 = vrot.slane %v844, 4
        %v878 = vadd.f32 %v844, %v877
        %v879 = vrot.slane %v878, 2
        %v880 = vadd.f32 %v878, %v879
        %v881 = vrot.slane %v880, 1
        %v882 = vadd.f32 %v880, %v881
        %v883 = vrot.slane %v845, 4
        %v884 = vadd.f32 %v845, %v883
        %v885 = vrot.slane %v884, 2
        %v886 = vadd.f32 %v884, %v885
        %v887 = vrot.slane %v886, 1
        %v888 = vadd.f32 %v886, %v887
        %v889 = vrot.slane %v846, 4
        %v890 = vadd.f32 %v846, %v889
        %v891 = vrot.slane %v890, 2
        %v892 = vadd.f32 %v890, %v891
        %v893 = vrot.slane %v892, 1
        %v894 = vadd.f32 %v892, %v893
        %vm903 = vcmask 1041409
        %v904 = vsel %vm903, %v858, %v852
        %vm905 = vcmask 1042434
        %v906 = vsel %vm905, %v864, %v904
        %vm907 = vcmask 1043459
        %v908 = vsel %vm907, %v870, %v906
        %vm909 = vcmask 1044484
        %v910 = vsel %vm909, %v876, %v908
        %vm911 = vcmask 1045509
        %v912 = vsel %vm911, %v882, %v910
        %vm913 = vcmask 1046534
        %v914 = vsel %vm913, %v888, %v912
        %vm915 = vcmask 1047559
        %v916 = vsel %vm915, %v894, %v914
        %918 = vst [vmem:[%s235] sm:$0xff] %v916
        %s919 = sand.u32 %s138, 1
        %s920 = scalar_lea.sflag [#allocation4], %s919
        %s921 = sand.u32 %s138, 1
        %s922 = smul.addr %s921, 8
        %s923 = scalar_lea.vmem [#allocation5], %s922
        // Predicated region
        $region45: #{tpu_custom_call.1} parent=39 // pred_check
          %p924 = pneg %p148
        $region46: #{tpu_custom_call.1} parent=39 // pred_check_branch
          %926 = sbr.rel (%p924) target = $region48
        $region47: #{tpu_custom_call.1} parent=39 // pred_region
          %928 = vsyncadd %s920, 0
          %s929 = smul.addr %s20, 8
          %s930 = scalar_lea.hbm %s5, %s929
          %s932 = sshll.u32 %s923, 4
          %s933 = int_to_ptr.vmem [resolvable:$true] %s932
          %s934 = sshll.u32 %s930, 4
          %s935 = int_to_ptr.hbm [resolvable:$true] %s934
          %937 = dma.vmem_to_hbm [thread:$0]  %s933, 128, %s935, %s920
        $region48: #{tpu_custom_call.1} parent=39 // pred_fallthru
          _
      $region40: #{tpu_custom_call.1} parent=5 // pred_fallthru
        _
      %p938 = scmp.le.s32.totalorder 2, %s15
      // Predicated region
      $region49: #{tpu_custom_call.1} parent=5 // pred_check
        %p939 = pneg %p938
      $region50: #{tpu_custom_call.1} parent=5 // pred_check_branch
        %941 = sbr.rel (%p939) target = $region52
      $region51: #{tpu_custom_call.1} parent=5 // pred_region
        %s942 = ssub.s32 %s15, 2
        // Predicated region
        $region53: #{tpu_custom_call.1} parent=51 // pred_check
          %p943 = pneg %p154
        $region54: #{tpu_custom_call.1} parent=51 // pred_check_branch
          %945 = sbr.rel (%p943) target = $region56
        $region55: #{tpu_custom_call.1} parent=51 // pred_region
          %s946 = sand.u32 %s139, 1
          %s947 = scalar_lea.sflag [#allocation4], %s946
          %s948 = sand.u32 %s139, 1
          %s949 = smul.addr %s948, 8
          %s950 = scalar_lea.vmem [#allocation5], %s949
          %952 = dma.done %s947, 128
        $region56: #{tpu_custom_call.1} parent=51 // pred_fallthru
          _
      $region52: #{tpu_custom_call.1} parent=5 // pred_fallthru
        _
    $region6: #{tpu_custom_call.1} parent=1 // loop_footer
      %s19 = sadd.s32 1, %s15
    $region7: #{tpu_custom_call.1} parent=1 // loop_footer_branch
      %14 = sbr.rel target = $region3
    $region8: #{tpu_custom_call.1} parent=1 // loop_exit
      _
    %953 = vsyncpa [#allocation3], 1
    %s954 = scalar_lea.sflag [#allocation3], 1
    %955 = vsyncpa %s954, 1
    %956 = vsyncpa [#allocation4], 1
    %s957 = scalar_lea.sflag [#allocation4], 1
    %958 = vsyncpa %s957, 1

// kernel: tpu_custom_call.1
$region0: #{tpu_custom_call.1}
  #allocation0 [shape = 'u32[]', space=smem, size = 0x4, offset = 0x4, fixed_abs, tag = 'smem constant byte address 0x4 - core index']
  #allocation1 [shape = 'u32[72,128]{1,0:T(1,128)}', space=vmem, size = 0x9000, scoped, tag = 'internal scratch']
  %s0 = inlined_call_operand.vmem [shape: bf16[128,64], index: 0, kind: input, shape index: {}]
  %s1 = inlined_call_operand.vmem [shape: bf16[64,256], index: 1, kind: input, shape index: {}]
  %s2 = inlined_call_operand.vmem [shape: f32[1,256], index: 2, kind: input, shape index: {}]
  %s3 = inlined_call_operand.hbm [shape: bf16[256,256], index: 3, kind: input, shape index: {}]
  %s4 = inlined_call_operand.vmem [shape: f32[1,256], index: 4, kind: input, shape index: {}]
  %s5 = inlined_call_operand.hbm [shape: f32[16,128], index: 5, kind: output, shape index: {}]
  %s6 = sld [smem:[#allocation0]]
  $region57: #{tpu_custom_call.1} parent=0
    _
  %s8 = ssub.s32 1, %s6
  %s9 = scalar_select 0, %s8, %s6
  $region1: #{tpu_custom_call.1} parent=0
    #allocation2 [shape = 'u8[131072]{0}', space=vmem, size = 0x20000, scoped, tag = 'input window, operand 3, single buffered']
    #allocation3 [shape = 's32[2]{0}', space=sflag, size = 0x8, scoped, tag = 'scoped memory for tpu_custom_call.1']
    #allocation4 [shape = 's32[2]{0}', space=sflag, size = 0x8, scoped, tag = 'scoped memory for tpu_custom_call.1']
    #allocation5 [shape = 'u8[8192]{0}', space=vmem, size = 0x2000, scoped, tag = 'output window, operand 0']
    %10 = vsyncpa [#allocation3], 0
    %11 = vsyncpa [#allocation4], 0
    %s12 = scalar_lea.sflag [#allocation4], 1
    %13 = vsyncpa %s12, 0
    loop: start=0, step=1, limit=4
    $region2: #{tpu_custom_call.1} parent=1 // loop_pre_header
      _
    $region3: #{tpu_custom_call.1} parent=1 // loop_header
      %s15 = sphi 0, %s19
      %p16 = scmp.ge.s32.totalorder %s15, 4
      %s25 = sphi 0, %s27
      %s28 = sphi 0, %s25
      %s29 = sphi 0, %s28
      %s45 = sphi 0, %s29
      %s49 = sphi 0, %s49
      %s51 = sphi 0, %s49
      %s52 = sphi 0, %s51
      %s66 = sphi 0, %s52
      %s70 = sphi 0, %s70
      %s72 = sphi 0, %s70
      %s73 = sphi 0, %s72
      %s87 = sphi 0, %s73
      %s91 = sphi 0, %s91
      %s93 = sphi 0, %s91
      %s94 = sphi 0, %s93
      %s108 = sphi 0, %s94
      %s112 = sphi 0, %s112
      %s114 = sphi 0, %s112
      %s115 = sphi 0, %s114
      %s129 = sphi 0, %s115
      %s135 = sphi 0, %s137
      %s138 = sphi 0, %s135
      %s139 = sphi 0, %s138
      %s155 = sphi 0, %s139
    $region4: #{tpu_custom_call.1} parent=1 // loop_header_branch
      %18 = sbr.rel (%p16) target = $region8
    $region5: #{tpu_custom_call.1} parent=1 // loop_body
      %s20 = ssub.s32 %s15, 1
      %s21 = ssub.s32 %s15, 2
      %s22 = sadd.s32 %s15, 1
      %s23 = ssub.s32 %s15, %s22
      %p24 = scmp.eq.s32.totalorder %s23, 0
      %s26 = sadd.s32 %s25, 1
      %s27 = scalar_select %p24, %s25, %s26
      %p30 = pneg %p24
      %p31 = scmp.eq.s32.totalorder %s15, 1
      %p32 = por %p30, %p31
      %p33 = scmp.ne.s32.totalorder %s25, %s28
      %p34 = scmp.eq.s32.totalorder %s15, 0
      %p35 = por %p33, %p34
      %p36 = scmp.ne.s32.totalorder %s25, %s28
      %p37 = scmp.eq.s32.totalorder %s20, 1
      %p38 = por %p36, %p37
      %p39 = scmp.ne.s32.totalorder %s28, %s29
      %p40 = scmp.eq.s32.totalorder %s20, 0
      %p41 = por %p39, %p40
      %p42 = scmp.ne.s32.totalorder %s28, %s29
      %p43 = scmp.eq.s32.totalorder %s21, 1
      %p44 = por %p42, %p43
      %p46 = scmp.ne.s32.totalorder %s29, %s45
      %p47 = scmp.eq.s32.totalorder %s21, 0
      %p48 = por %p46, %p47
      %s50 = sadd.s32 %s49, 1
      %p53 = scmp.eq.s32.totalorder %s15, 1
      %p54 = scmp.ne.s32.totalorder %s49, %s51
      %p55 = scmp.eq.s32.totalorder %s15, 0
      %p56 = por %p54, %p55
      %p57 = scmp.ne.s32.totalorder %s49, %s51
      %p58 = scmp.eq.s32.totalorder %s20, 1
      %p59 = por %p57, %p58
      %p60 = scmp.ne.s32.totalorder %s51, %s52
      %p61 = scmp.eq.s32.totalorder %s20, 0
      %p62 = por %p60, %p61
      %p63 = scmp.ne.s32.totalorder %s51, %s52
      %p64 = scmp.eq.s32.totalorder %s21, 1
      %p65 = por %p63, %p64
      %p67 = scmp.ne.s32.totalorder %s52, %s66
      %p68 = scmp.eq.s32.totalorder %s21, 0
      %p69 = por %p67, %p68
      %s71 = sadd.s32 %s70, 1
      %p74 = scmp.eq.s32.totalorder %s15, 1
      %p75 = scmp.ne.s32.totalorder %s70, %s72
      %p76 = scmp.eq.s32.totalorder %s15, 0
      %p77 = por %p75, %p76
      %p78 = scmp.ne.s32.totalorder %s70, %s72
      %p79 = scmp.eq.s32.totalorder %s20, 1
      %p80 = por %p78, %p79
      %p81 = scmp.ne.s32.totalorder %s72, %s73
      %p82 = scmp.eq.s32.totalorder %s20, 0
      %p83 = por %p81, %p82
      %p84 = scmp.ne.s32.totalorder %s72, %s73
      %p85 = scmp.eq.s32.totalorder %s21, 1
      %p86 = por %p84, %p85
      %p88 = scmp.ne.s32.totalorder %s73, %s87
      %p89 = scmp.eq.s32.totalorder %s21, 0
      %p90 = por %p88, %p89
      %s92 = sadd.s32 %s91, 1
      %p95 = scmp.eq.s32.totalorder %s15, 1
      %p96 = scmp.ne.s32.totalorder %s91, %s93
      %p97 = scmp.eq.s32.totalorder %s15, 0
      %p98 = por %p96, %p97
      %p99 = scmp.ne.s32.totalorder %s91, %s93
      %p100 = scmp.eq.s32.totalorder %s20, 1
      %p101 = por %p99, %p100
      %p102 = scmp.ne.s32.totalorder %s93, %s94
      %p103 = scmp.eq.s32.totalorder %s20, 0
      %p104 = por %p102, %p103
      %p105 = scmp.ne.s32.totalorder %s93, %s94
      %p106 = scmp.eq.s32.totalorder %s21, 1
      %p107 = por %p105, %p106
      %p109 = scmp.ne.s32.totalorder %s94, %s108
      %p110 = scmp.eq.s32.totalorder %s21, 0
      %p111 = por %p109, %p110
      %s113 = sadd.s32 %s112, 1
      %p116 = scmp.eq.s32.totalorder %s15, 1
      %p117 = scmp.ne.s32.totalorder %s112, %s114
      %p118 = scmp.eq.s32.totalorder %s15, 0
      %p119 = por %p117, %p118
      %p120 = scmp.ne.s32.totalorder %s112, %s114
      %p121 = scmp.eq.s32.totalorder %s20, 1
      %p122 = por %p120, %p121
      %p123 = scmp.ne.s32.totalorder %s114, %s115
      %p124 = scmp.eq.s32.totalorder %s20, 0
      %p125 = por %p123, %p124
      %p126 = scmp.ne.s32.totalorder %s114, %s115
      %p127 = scmp.eq.s32.totalorder %s21, 1
      %p128 = por %p126, %p127
      %p130 = scmp.ne.s32.totalorder %s115, %s129
      %p131 = scmp.eq.s32.totalorder %s21, 0
      %p132 = por %p130, %p131
      %s133 = ssub.s32 %s15, %s22
      %p134 = scmp.eq.s32.totalorder %s133, 0
      %s136 = sadd.s32 %s135, 1
      %s137 = scalar_select %p134, %s135, %s136
      %p140 = pneg %p134
      %p141 = scmp.eq.s32.totalorder %s15, 1
      %p142 = por %p140, %p141
      %p143 = scmp.ne.s32.totalorder %s135, %s138
      %p144 = scmp.eq.s32.totalorder %s15, 0
      %p145 = por %p143, %p144
      %p146 = scmp.ne.s32.totalorder %s135, %s138
      %p147 = scmp.eq.s32.totalorder %s20, 1
      %p148 = por %p146, %p147
      %p149 = scmp.ne.s32.totalorder %s138, %s139
      %p150 = scmp.eq.s32.totalorder %s20, 0
      %p151 = por %p149, %p150
      %p152 = scmp.ne.s32.totalorder %s138, %s139
      %p153 = scmp.eq.s32.totalorder %s21, 1
      %p154 = por %p152, %p153
      %p156 = scmp.ne.s32.totalorder %s139, %s155
      %p157 = scmp.eq.s32.totalorder %s21, 0
      %p158 = por %p156, %p157
      %p159 = scmp.le.s32.totalorder 1, %s15
      %p160 = scmp.lt.s32.totalorder %s15, 3
      %p161 = pnand %p159, %p160
      %p162 = pneg %p161
      // Predicated region
      $region9: #{tpu_custom_call.1} parent=5 // pred_check
        _
      $region10: #{tpu_custom_call.1} parent=5 // pred_check_branch
        %164 = sbr.rel (%p161) target = $region12
      $region11: #{tpu_custom_call.1} parent=5 // pred_region
        %s165 = ssub.s32 %s15, 1
        // Predicated region
        $region13: #{tpu_custom_call.1} parent=11 // pred_check
          %p166 = pneg %p62
        $region14: #{tpu_custom_call.1} parent=11 // pred_check_branch
          %168 = sbr.rel (%p166) target = $region16
        $region15: #{tpu_custom_call.1} parent=11 // pred_region
          _
        $region16: #{tpu_custom_call.1} parent=11 // pred_fallthru
          _
        // Predicated region
        $region17: #{tpu_custom_call.1} parent=11 // pred_check
          %p169 = pneg %p83
        $region18: #{tpu_custom_call.1} parent=11 // pred_check_branch
          %171 = sbr.rel (%p169) target = $region20
        $region19: #{tpu_custom_call.1} parent=11 // pred_region
          _
        $region20: #{tpu_custom_call.1} parent=11 // pred_fallthru
          _
        // Predicated region
        $region21: #{tpu_custom_call.1} parent=11 // pred_check
          %p172 = pneg %p104
        $region22: #{tpu_custom_call.1} parent=11 // pred_check_branch
          %174 = sbr.rel (%p172) target = $region24
        $region23: #{tpu_custom_call.1} parent=11 // pred_region
          %176 = vsyncadd [#allocation3], 0
          %s177 = sshll.u32 %s3, 4
          %s178 = int_to_ptr.hbm [resolvable:$true] %s177
          %s179 = sshll.u32 [#allocation2], 4
          %s180 = int_to_ptr.vmem [resolvable:$true] %s179
          %185 = dma.hbm_to_vmem [thread:$0]  %s178, 4096, %s180, [#allocation3], 128, 128, 8
        $region24: #{tpu_custom_call.1} parent=11 // pred_fallthru
          _
        // Predicated region
        $region25: #{tpu_custom_call.1} parent=11 // pred_check
          %p186 = pneg %p125
        $region26: #{tpu_custom_call.1} parent=11 // pred_check_branch
          %188 = sbr.rel (%p186) target = $region28
        $region27: #{tpu_custom_call.1} parent=11 // pred_region
          _
        $region28: #{tpu_custom_call.1} parent=11 // pred_fallthru
          _
      $region12: #{tpu_custom_call.1} parent=5 // pred_fallthru
        _
      %p189 = scmp.lt.s32.totalorder %s15, 2
      // Predicated region
      $region29: #{tpu_custom_call.1} parent=5 // pred_check
        %p190 = pneg %p189
      $region30: #{tpu_custom_call.1} parent=5 // pred_check_branch
        %192 = sbr.rel (%p190) target = $region32
      $region31: #{tpu_custom_call.1} parent=5 // pred_region
        // Predicated region
        $region33: #{tpu_custom_call.1} parent=31 // pred_check
          %p193 = pneg %p35
        $region34: #{tpu_custom_call.1} parent=31 // pred_check_branch
          %195 = sbr.rel (%p193) target = $region36
        $region35: #{tpu_custom_call.1} parent=31 // pred_region
          %s196 = smul.u32 8, %s15
          %p197 = scmp.lt.s32.totalorder %s196, 15
          %s198 = scalar_select %p197, %s196, 15
          %s199 = smul.addr %s198, 4
          %s200 = scalar_lea.vmem %s0, %s199
          %s201 = smul.u32 8, %s15
        $region36: #{tpu_custom_call.1} parent=31 // pred_fallthru
          _
      $region32: #{tpu_custom_call.1} parent=5 // pred_fallthru
        _
      %p202 = scmp.le.s32.totalorder 1, %s15
      %p203 = scmp.lt.s32.totalorder %s15, 3
      %p204 = pnand %p202, %p203
      %p205 = pneg %p204
      // Predicated region
      $region37: #{tpu_custom_call.1} parent=5 // pred_check
        _
      $region38: #{tpu_custom_call.1} parent=5 // pred_check_branch
        %207 = sbr.rel (%p204) target = $region40
      $region39: #{tpu_custom_call.1} parent=5 // pred_region
        %s208 = ssub.s32 %s15, 1
        // Predicated region
        $region41: #{tpu_custom_call.1} parent=39 // pred_check
          %p209 = pneg %p104
        $region42: #{tpu_custom_call.1} parent=39 // pred_check_branch
          %211 = sbr.rel (%p209) target = $region44
        $region43: #{tpu_custom_call.1} parent=39 // pred_region
          %213 = dma.done [#allocation3], 4096
        $region44: #{tpu_custom_call.1} parent=39 // pred_fallthru
          _
        %s214 = smul.u32 8, %s20
        %p215 = scmp.lt.s32.totalorder %s214, 15
        %s216 = scalar_select %p215, %s214, 15
        %s217 = smul.addr %s216, 4
        %s218 = scalar_lea.vmem %s0, %s217
        %p219 = pneg %p41
        %p220 = pneg %p38
        %p221 = pneg %p62
        %p222 = pneg %p59
        %p223 = pneg %p83
        %p224 = pneg %p80
        %p225 = pneg %p104
        %p226 = pneg %p101
        %p227 = pneg %p125
        %p228 = pneg %p122
        %p229 = pneg %p151
        %p230 = pneg %p148
        %s231 = sand.u32 %s138, 1
        %s232 = scalar_lea.sflag [#allocation4], %s231
        %s233 = sand.u32 %s138, 1
        %s234 = smul.addr %s233, 8
        %s235 = scalar_lea.vmem [#allocation5], %s234
        %s236 = smul.u32 8, %s20
        %p237 = scmp.lt.s32.totalorder %s236, 15
        %s238 = scalar_select %p237, %s236, 15
        %s239 = smul.addr %s238, 4
        %s240 = scalar_lea.vmem %s0, %s239
        %s241 = smul.u32 8, %s20
        %v243 = vld [vmem:[%s240] sm:$0xf]
        %v244 = vld [vmem:[%s240 + $0x4] sm:$0xf]
        %v245 = vld [vmem:[%s240 + $0x8] sm:$0xf]
        %v246 = vld [vmem:[%s240 + $0xc] sm:$0xf]
        %v247 = vld [vmem:[%s240 + $0x10] sm:$0xf]
        %v248 = vld [vmem:[%s240 + $0x14] sm:$0xf]
        %v249 = vld [vmem:[%s240 + $0x18] sm:$0xf]
        %v250 = vld [vmem:[%s240 + $0x1c] sm:$0xf]
        %v251 = vld [vmem:[%s1] sm:$0xff]
        %v252 = vld [vmem:[%s1 + $0x8] sm:$0xff]
        %v253 = vld [vmem:[%s1 + $0x10] sm:$0xff]
        %v254 = vld [vmem:[%s1 + $0x18] sm:$0xff]
        %v255 = vld [vmem:[%s1 + $0x20] sm:$0xff]
        %v256 = vld [vmem:[%s1 + $0x28] sm:$0xff]
        %v257 = vld [vmem:[%s1 + $0x30] sm:$0xff]
        %v258 = vld [vmem:[%s1 + $0x38] sm:$0xff]
        %v259 = vld [vmem:[%s2] sm:$0x3]
        %v261 = vperm.slane %v259, 0
        %v262 = vperm.slane %v259, 1
        %v273 = vunpack.c.l.b16 %v243
        %v274 = vunpack.c.l.b16 %v244
        %v275 = vunpack.c.l.b16 %v245
        %v276 = vunpack.c.l.b16 %v246
        %v277 = vunpack.c.l.b16 %v247
        %v278 = vunpack.c.l.b16 %v248
        %v279 = vunpack.c.l.b16 %v249
        %v280 = vunpack.c.l.b16 %v250
        %v281 = vpack.c.b16 %v274, %v273
        %v282 = vpack.c.b16 %v276, %v275
        %v283 = vpack.c.b16 %v278, %v277
        %v284 = vpack.c.b16 %v280, %v279
        %v293 = vunpack.c.l.b16 %v251
        %v294 = vunpack.c.h.b16 %v251
        %v295 = vunpack.c.l.b16 %v252
        %v296 = vunpack.c.h.b16 %v252
        %v297 = vunpack.c.l.b16 %v253
        %v298 = vunpack.c.h.b16 %v253
        %v299 = vunpack.c.l.b16 %v254
        %v300 = vunpack.c.h.b16 %v254
        %v301 = vunpack.c.l.b16 %v255
        %v302 = vunpack.c.h.b16 %v255
        %v303 = vunpack.c.l.b16 %v256
        %v304 = vunpack.c.h.b16 %v256
        %v305 = vunpack.c.l.b16 %v257
        %v306 = vunpack.c.h.b16 %v257
        %v307 = vunpack.c.l.b16 %v258
        %v308 = vunpack.c.h.b16 %v258
        %v309 = vpack.c.b16 %v295, %v293
        %v310 = vpack.c.b16 %v296, %v294
        %v311 = vpack.c.b16 %v299, %v297
        %v312 = vpack.c.b16 %v300, %v298
        %v313 = vpack.c.b16 %v303, %v301
        %v314 = vpack.c.b16 %v304, %v302
        %v315 = vpack.c.b16 %v307, %v305
        %v316 = vpack.c.b16 %v308, %v306
        %vm325 = vcmask 523264
        %v327 = vsel %vm325, %v281, 0
        %v330 = vsel %vm325, %v282, 0
        %v333 = vsel %vm325, %v283, 0
        %v336 = vsel %vm325, %v284, 0
        %338 = vmatpush.bf16.msra.mxu0 0
        %339 = vmatpush.bf16.msra.mxu0 0
        %340 = vmatpush.bf16.msra.mxu0 0
        %341 = vmatpush.bf16.msra.mxu0 0
        %342 = vmatpush.bf16.msra.mxu0 %v315
        %343 = vmatpush.bf16.msra.mxu0 %v313
        %344 = vmatpush.bf16.msra.mxu0 %v311
        %345 = vmatpush.bf16.msra.mxu0 %v309
        %346 = vmatmul.bf16.gmra.mxu0 %v327
        %v347 = vpop.f32.mrf.mxu0
        %v348 = vadd.f32 %v261, %v347
        %v349 = vpop.f32.mrf.mxu0
        %v350 = vadd.f32 %v261, %v349
        %351 = vmatmul.bf16.gmra.mxu0 %v330
        %v352 = vpop.f32.mrf.mxu0
        %v353 = vadd.f32 %v261, %v352
        %v354 = vpop.f32.mrf.mxu0
        %v355 = vadd.f32 %v261, %v354
        %356 = vmatmul.bf16.gmra.mxu0 %v333
        %v357 = vpop.f32.mrf.mxu0
        %v358 = vadd.f32 %v261, %v357
        %v359 = vpop.f32.mrf.mxu0
        %v360 = vadd.f32 %v261, %v359
        %361 = vmatmul.bf16.gmra.mxu0 %v336
        %v362 = vpop.f32.mrf.mxu0
        %v363 = vadd.f32 %v261, %v362
        %v364 = vpop.f32.mrf.mxu0
        %v365 = vadd.f32 %v261, %v364
        %366 = vdwg.mxu0
        %367 = vmatpush.bf16.msra.mxu0 0
        %368 = vmatpush.bf16.msra.mxu0 0
        %369 = vmatpush.bf16.msra.mxu0 0
        %370 = vmatpush.bf16.msra.mxu0 0
        %371 = vmatpush.bf16.msra.mxu0 %v316
        %372 = vmatpush.bf16.msra.mxu0 %v314
        %373 = vmatpush.bf16.msra.mxu0 %v312
        %374 = vmatpush.bf16.msra.mxu0 %v310
        %375 = vmatmul.bf16.gmra.mxu0 %v327
        %v376 = vpop.f32.mrf.mxu0
        %v377 = vadd.f32 %v262, %v376
        %v378 = vpop.f32.mrf.mxu0
        %v379 = vadd.f32 %v262, %v378
        %380 = vmatmul.bf16.gmra.mxu0 %v330
        %v381 = vpop.f32.mrf.mxu0
        %v382 = vadd.f32 %v262, %v381
        %v383 = vpop.f32.mrf.mxu0
        %v384 = vadd.f32 %v262, %v383
        %385 = vmatmul.bf16.gmra.mxu0 %v333
        %v386 = vpop.f32.mrf.mxu0
        %v387 = vadd.f32 %v262, %v386
        %v388 = vpop.f32.mrf.mxu0
        %v389 = vadd.f32 %v262, %v388
        %390 = vmatmul.bf16.gmra.mxu0 %v336
        %v391 = vpop.f32.mrf.mxu0
        %v392 = vadd.f32 %v262, %v391
        %v393 = vpop.f32.mrf.mxu0
        %v394 = vadd.f32 %v262, %v393
        %395 = vdwg.mxu0
        %v396 = vmax.f32 %v348, 0.0
        %v397 = vmax.f32 %v377, 0.0
        %v398 = vmax.f32 %v350, 0.0
        %v399 = vmax.f32 %v379, 0.0
        %v400 = vmax.f32 %v353, 0.0
        %v401 = vmax.f32 %v382, 0.0
        %v402 = vmax.f32 %v355, 0.0
        %v403 = vmax.f32 %v384, 0.0
        %v404 = vmax.f32 %v358, 0.0
        %v405 = vmax.f32 %v387, 0.0
        %v406 = vmax.f32 %v360, 0.0
        %v407 = vmax.f32 %v389, 0.0
        %v408 = vmax.f32 %v363, 0.0
        %v409 = vmax.f32 %v392, 0.0
        %v410 = vmax.f32 %v365, 0.0
        %v411 = vmax.f32 %v394, 0.0
        %v412 = vpack.c.bf16 %v398, %v396
        %v413 = vpack.c.bf16 %v399, %v397
        %v414 = vpack.c.bf16 %v402, %v400
        %v415 = vpack.c.bf16 %v403, %v401
        %v416 = vpack.c.bf16 %v406, %v404
        %v417 = vpack.c.bf16 %v407, %v405
        %v418 = vpack.c.bf16 %v410, %v408
        %v419 = vpack.c.bf16 %v411, %v409
        %v420 = vld [vmem:[%s4] sm:$0x3]
        %v421 = vld [vmem:[#allocation2] sm:$0xff]
        %v422 = vld [vmem:[#allocation2 + $0x8] sm:$0xff]
        %v423 = vld [vmem:[#allocation2 + $0x10] sm:$0xff]
        %v424 = vld [vmem:[#allocation2 + $0x18] sm:$0xff]
        %v425 = vld [vmem:[#allocation2 + $0x20] sm:$0xff]
        %v426 = vld [vmem:[#allocation2 + $0x28] sm:$0xff]
        %v427 = vld [vmem:[#allocation2 + $0x30] sm:$0xff]
        %v428 = vld [vmem:[#allocation2 + $0x38] sm:$0xff]
        %v429 = vld [vmem:[#allocation2 + $0x40] sm:$0xff]
        %v430 = vld [vmem:[#allocation2 + $0x48] sm:$0xff]
        %v431 = vld [vmem:[#allocation2 + $0x50] sm:$0xff]
        %v432 = vld [vmem:[#allocation2 + $0x58] sm:$0xff]
        %v433 = vld [vmem:[#allocation2 + $0x60] sm:$0xff]
        %v434 = vld [vmem:[#allocation2 + $0x68] sm:$0xff]
        %v435 = vld [vmem:[#allocation2 + $0x70] sm:$0xff]
        %v436 = vld [vmem:[#allocation2 + $0x78] sm:$0xff]
        %v437 = vld [vmem:[#allocation2 + $0x80] sm:$0xff]
        %v438 = vld [vmem:[#allocation2 + $0x88] sm:$0xff]
        %v439 = vld [vmem:[#allocation2 + $0x90] sm:$0xff]
        %v440 = vld [vmem:[#allocation2 + $0x98] sm:$0xff]
        %v441 = vld [vmem:[#allocation2 + $0xa0] sm:$0xff]
        %v442 = vld [vmem:[#allocation2 + $0xa8] sm:$0xff]
        %v443 = vld [vmem:[#allocation2 + $0xb0] sm:$0xff]
        %v444 = vld [vmem:[#allocation2 + $0xb8] sm:$0xff]
        %v445 = vld [vmem:[#allocation2 + $0xc0] sm:$0xff]
        %v446 = vld [vmem:[#allocation2 + $0xc8] sm:$0xff]
        %v447 = vld [vmem:[#allocation2 + $0xd0] sm:$0xff]
        %v448 = vld [vmem:[#allocation2 + $0xd8] sm:$0xff]
        %v449 = vld [vmem:[#allocation2 + $0xe0] sm:$0xff]
        %v450 = vld [vmem:[#allocation2 + $0xe8] sm:$0xff]
        %v451 = vld [vmem:[#allocation2 + $0xf0] sm:$0xff]
        %v452 = vld [vmem:[#allocation2 + $0xf8] sm:$0xff]
        %v454 = vperm.slane %v420, 0
        %v455 = vperm.slane %v420, 1
        %v490 = vunpack.c.l.b16 %v421
        %v491 = vunpack.c.h.b16 %v421
        %v492 = vunpack.c.l.b16 %v422
        %v493 = vunpack.c.h.b16 %v422
        %v494 = vunpack.c.l.b16 %v423
        %v495 = vunpack.c.h.b16 %v423
        %v496 = vunpack.c.l.b16 %v424
        %v497 = vunpack.c.h.b16 %v424
        %v498 = vunpack.c.l.b16 %v425
        %v499 = vunpack.c.h.b16 %v425
        %v500 = vunpack.c.l.b16 %v426
        %v501 = vunpack.c.h.b16 %v426
        %v502 = vunpack.c.l.b16 %v427
        %v503 = vunpack.c.h.b16 %v427
        %v504 = vunpack.c.l.b16 %v428
        %v505 = vunpack.c.h.b16 %v428
        %v506 = vunpack.c.l.b16 %v429
        %v507 = vunpack.c.h.b16 %v429
        %v508 = vunpack.c.l.b16 %v430
        %v509 = vunpack.c.h.b16 %v430
        %v510 = vunpack.c.l.b16 %v431
        %v511 = vunpack.c.h.b16 %v431
        %v512 = vunpack.c.l.b16 %v432
        %v513 = vunpack.c.h.b16 %v432
        %v514 = vunpack.c.l.b16 %v433
        %v515 = vunpack.c.h.b16 %v433
        %v516 = vunpack.c.l.b16 %v434
        %v517 = vunpack.c.h.b16 %v434
        %v518 = vunpack.c.l.b16 %v435
        %v519 = vunpack.c.h.b16 %v435
        %v520 = vunpack.c.l.b16 %v436
        %v521 = vunpack.c.h.b16 %v436
        %v522 = vunpack.c.l.b16 %v437
        %v523 = vunpack.c.h.b16 %v437
        %v524 = vunpack.c.l.b16 %v438
        %v525 = vunpack.c.h.b16 %v438
        %v526 = vunpack.c.l.b16 %v439
        %v527 = vunpack.c.h.b16 %v439
        %v528 = vunpack.c.l.b16 %v440
        %v529 = vunpack.c.h.b16 %v440
        %v530 = vunpack.c.l.b16 %v441
        %v531 = vunpack.c.h.b16 %v441
        %v532 = vunpack.c.l.b16 %v442
        %v533 = vunpack.c.h.b16 %v442
        %v534 = vunpack.c.l.b16 %v443
        %v535 = vunpack.c.h.b16 %v443
        %v536 = vunpack.c.l.b16 %v444
        %v537 = vunpack.c.h.b16 %v444
        %v538 = vunpack.c.l.b16 %v445
        %v539 = vunpack.c.h.b16 %v445
        %v540 = vunpack.c.l.b16 %v446
        %v541 = vunpack.c.h.b16 %v446
        %v542 = vunpack.c.l.b16 %v447
        %v543 = vunpack.c.h.b16 %v447
        %v544 = vunpack.c.l.b16 %v448
        %v545 = vunpack.c.h.b16 %v448
        %v546 = vunpack.c.l.b16 %v449
        %v547 = vunpack.c.h.b16 %v449
        %v548 = vunpack.c.l.b16 %v450
        %v549 = vunpack.c.h.b16 %v450
        %v550 = vunpack.c.l.b16 %v451
        %v551 = vunpack.c.h.b16 %v451
        %v552 = vunpack.c.l.b16 %v452
        %v553 = vunpack.c.h.b16 %v452
        %v554 = vpack.c.b16 %v492, %v490
        %v555 = vpack.c.b16 %v493, %v491
        %v556 = vpack.c.b16 %v496, %v494
        %v557 = vpack.c.b16 %v497, %v495
        %v558 = vpack.c.b16 %v500, %v498
        %v559 = vpack.c.b16 %v501, %v499
        %v560 = vpack.c.b16 %v504, %v502
        %v561 = vpack.c.b16 %v505, %v503
        %v562 = vpack.c.b16 %v508, %v506
        %v563 = vpack.c.b16 %v509, %v507
        %v564 = vpack.c.b16 %v512, %v510
        %v565 = vpack.c.b16 %v513, %v511
        %v566 = vpack.c.b16 %v516, %v514
        %v567 = vpack.c.b16 %v517, %v515
        %v568 = vpack.c.b16 %v520, %v518
        %v569 = vpack.c.b16 %v521, %v519
        %v570 = vpack.c.b16 %v524, %v522
        %v571 = vpack.c.b16 %v525, %v523
        %v572 = vpack.c.b16 %v528, %v526
        %v573 = vpack.c.b16 %v529, %v527
        %v574 = vpack.c.b16 %v532, %v530
        %v575 = vpack.c.b16 %v533, %v531
        %v576 = vpack.c.b16 %v536, %v534
        %v577 = vpack.c.b16 %v537, %v535
        %v578 = vpack.c.b16 %v540, %v538
        %v579 = vpack.c.b16 %v541, %v539
        %v580 = vpack.c.b16 %v544, %v542
        %v581 = vpack.c.b16 %v545, %v543
        %v582 = vpack.c.b16 %v548, %v546
        %v583 = vpack.c.b16 %v549, %v547
        %v584 = vpack.c.b16 %v552, %v550
        %v585 = vpack.c.b16 %v553, %v551
        %618 = vmatpush.bf16.msra.mxu0 %v568
        %619 = vmatpush.bf16.msra.mxu0 %v566
        %620 = vmatpush.bf16.msra.mxu0 %v564
        %621 = vmatpush.bf16.msra.mxu0 %v562
        %622 = vmatpush.bf16.msra.mxu0 %v560
        %623 = vmatpush.bf16.msra.mxu0 %v558
        %624 = vmatpush.bf16.msra.mxu0 %v556
        %625 = vmatpush.bf16.msra.mxu0 %v554
        %626 = vmatmul.bf16.gmra.mxu0 %v412
        %v627 = vpop.f32.mrf.mxu0
        %v628 = vadd.f32 %v454, %v627
        %v629 = vpop.f32.mrf.mxu0
        %v630 = vadd.f32 %v454, %v629
        %631 = vmatmul.bf16.gmra.mxu0 %v414
        %v632 = vpop.f32.mrf.mxu0
        %v633 = vadd.f32 %v454, %v632
        %v634 = vpop.f32.mrf.mxu0
        %v635 = vadd.f32 %v454, %v634
        %636 = vmatmul.bf16.gmra.mxu0 %v416
        %v637 = vpop.f32.mrf.mxu0
        %v638 = vadd.f32 %v454, %v637
        %v639 = vpop.f32.mrf.mxu0
        %v640 = vadd.f32 %v454, %v639
        %641 = vmatmul.bf16.gmra.mxu0 %v418
        %v642 = vpop.f32.mrf.mxu0
        %v643 = vadd.f32 %v454, %v642
        %v644 = vpop.f32.mrf.mxu0
        %v645 = vadd.f32 %v454, %v644
        %646 = vdwg.mxu0
        %647 = vmatpush.bf16.msra.mxu0 %v584
        %648 = vmatpush.bf16.msra.mxu0 %v582
        %649 = vmatpush.bf16.msra.mxu0 %v580
        %650 = vmatpush.bf16.msra.mxu0 %v578
        %651 = vmatpush.bf16.msra.mxu0 %v576
        %652 = vmatpush.bf16.msra.mxu0 %v574
        %653 = vmatpush.bf16.msra.mxu0 %v572
        %654 = vmatpush.bf16.msra.mxu0 %v570
        %655 = vmatmul.bf16.gmra.mxu0 %v413
        %v656 = vpop.f32.mrf.mxu0
        %v657 = vadd.f32 %v628, %v656
        %v658 = vpop.f32.mrf.mxu0
        %v659 = vadd.f32 %v630, %v658
        %660 = vmatmul.bf16.gmra.mxu0 %v415
        %v661 = vpop.f32.mrf.mxu0
        %v662 = vadd.f32 %v633, %v661
        %v663 = vpop.f32.mrf.mxu0
        %v664 = vadd.f32 %v635, %v663
        %665 = vmatmul.bf16.gmra.mxu0 %v417
        %v666 = vpop.f32.mrf.mxu0
        %v667 = vadd.f32 %v638, %v666
        %v668 = vpop.f32.mrf.mxu0
        %v669 = vadd.f32 %v640, %v668
        %670 = vmatmul.bf16.gmra.mxu0 %v419
        %v671 = vpop.f32.mrf.mxu0
        %v672 = vadd.f32 %v643, %v671
        %v673 = vpop.f32.mrf.mxu0
        %v674 = vadd.f32 %v645, %v673
        %675 = vdwg.mxu0
        %676 = vmatpush.bf16.msra.mxu0 %v569
        %677 = vmatpush.bf16.msra.mxu0 %v567
        %678 = vmatpush.bf16.msra.mxu0 %v565
        %679 = vmatpush.bf16.msra.mxu0 %v563
        %680 = vmatpush.bf16.msra.mxu0 %v561
        %681 = vmatpush.bf16.msra.mxu0 %v559
        %682 = vmatpush.bf16.msra.mxu0 %v557
        %683 = vmatpush.bf16.msra.mxu0 %v555
        %684 = vmatmul.bf16.gmra.mxu0 %v412
        %v685 = vpop.f32.mrf.mxu0
        %v686 = vadd.f32 %v455, %v685
        %v687 = vpop.f32.mrf.mxu0
        %v688 = vadd.f32 %v455, %v687
        %689 = vmatmul.bf16.gmra.mxu0 %v414
        %v690 = vpop.f32.mrf.mxu0
        %v691 = vadd.f32 %v455, %v690
        %v692 = vpop.f32.mrf.mxu0
        %v693 = vadd.f32 %v455, %v692
        %694 = vmatmul.bf16.gmra.mxu0 %v416
        %v695 = vpop.f32.mrf.mxu0
        %v696 = vadd.f32 %v455, %v695
        %v697 = vpop.f32.mrf.mxu0
        %v698 = vadd.f32 %v455, %v697
        %699 = vmatmul.bf16.gmra.mxu0 %v418
        %v700 = vpop.f32.mrf.mxu0
        %v701 = vadd.f32 %v455, %v700
        %v702 = vpop.f32.mrf.mxu0
        %v703 = vadd.f32 %v455, %v702
        %704 = vdwg.mxu0
        %705 = vmatpush.bf16.msra.mxu0 %v585
        %706 = vmatpush.bf16.msra.mxu0 %v583
        %707 = vmatpush.bf16.msra.mxu0 %v581
        %708 = vmatpush.bf16.msra.mxu0 %v579
        %709 = vmatpush.bf16.msra.mxu0 %v577
        %710 = vmatpush.bf16.msra.mxu0 %v575
        %711 = vmatpush.bf16.msra.mxu0 %v573
        %712 = vmatpush.bf16.msra.mxu0 %v571
        %713 = vmatmul.bf16.gmra.mxu0 %v413
        %v714 = vpop.f32.mrf.mxu0
        %v715 = vadd.f32 %v686, %v714
        %v716 = vpop.f32.mrf.mxu0
        %v717 = vadd.f32 %v688, %v716
        %718 = vmatmul.bf16.gmra.mxu0 %v415
        %v719 = vpop.f32.mrf.mxu0
        %v720 = vadd.f32 %v691, %v719
        %v721 = vpop.f32.mrf.mxu0
        %v722 = vadd.f32 %v693, %v721
        %723 = vmatmul.bf16.gmra.mxu0 %v417
        %v724 = vpop.f32.mrf.mxu0
        %v725 = vadd.f32 %v696, %v724
        %v726 = vpop.f32.mrf.mxu0
        %v727 = vadd.f32 %v698, %v726
        %728 = vmatmul.bf16.gmra.mxu0 %v419
        %v729 = vpop.f32.mrf.mxu0
        %v730 = vadd.f32 %v701, %v729
        %v731 = vpop.f32.mrf.mxu0
        %v732 = vadd.f32 %v703, %v731
        %733 = vdwg.mxu0
        %v734 = vsub.f32 0.0, %v657
        %v735 = vsub.f32 0.0, %v659
        %v736 = vsub.f32 0.0, %v662
        %v737 = vsub.f32 0.0, %v664
        %v738 = vsub.f32 0.0, %v667
        %v739 = vsub.f32 0.0, %v669
        %v740 = vsub.f32 0.0, %v672
        %v741 = vsub.f32 0.0, %v674
        %v742 = vmul.f32 %v734, 1.442695
        %v743 = vpow.pop %v742
        %v744 = vmul.f32 %v735, 1.442695
        %v745 = vpow.pop %v744
        %v746 = vmul.f32 %v736, 1.442695
        %v747 = vpow.pop %v746
        %v748 = vmul.f32 %v737, 1.442695
        %v749 = vpow.pop %v748
        %v750 = vmul.f32 %v738, 1.442695
        %v751 = vpow.pop %v750
        %v752 = vmul.f32 %v739, 1.442695
        %v753 = vpow.pop %v752
        %v754 = vmul.f32 %v740, 1.442695
        %v755 = vpow.pop %v754
        %v756 = vmul.f32 %v741, 1.442695
        %v757 = vpow.pop %v756
        %v758 = vadd.f32 %v743, 1.0
        %v759 = vadd.f32 %v745, 1.0
        %v760 = vadd.f32 %v747, 1.0
        %v761 = vadd.f32 %v749, 1.0
        %v762 = vadd.f32 %v751, 1.0
        %v763 = vadd.f32 %v753, 1.0
        %v764 = vadd.f32 %v755, 1.0
        %v765 = vadd.f32 %v757, 1.0
        %v766 = vrcp.pop %v758
        %v767 = vrcp.pop %v759
        %v768 = vrcp.pop %v760
        %v769 = vrcp.pop %v761
        %v770 = vrcp.pop %v762
        %v771 = vrcp.pop %v763
        %v772 = vrcp.pop %v764
        %v773 = vrcp.pop %v765
        %v774 = vmul.f32 %v766, %v715
        %v775 = vmul.f32 %v767, %v717
        %v776 = vmul.f32 %v768, %v720
        %v777 = vmul.f32 %v769, %v722
        %v778 = vmul.f32 %v770, %v725
        %v779 = vmul.f32 %v771, %v727
        %v780 = vmul.f32 %v772, %v730
        %v781 = vmul.f32 %v773, %v732
        %v782 = vunpack.c.l.bf16 %v243
        %v783 = vunpack.c.l.bf16 %v244
        %v784 = vunpack.c.l.bf16 %v245
        %v785 = vunpack.c.l.bf16 %v246
        %v786 = vunpack.c.l.bf16 %v247
        %v787 = vunpack.c.l.bf16 %v248
        %v788 = vunpack.c.l.bf16 %v249
        %v789 = vunpack.c.l.bf16 %v250
        %vm790 = vcmask 261120
        %v791 = vsel %vm790, %v782, 0.0
        %792 = vadd.xlane.f32.xlu0 %v791
        %v793 = vpop.xlane.xlu0 %792
        %v794 = vsel %vm790, %v783, 0.0
        %795 = vadd.xlane.f32.xlu0 %v794
        %v796 = vpop.xlane.xlu0 %795
        %v797 = vsel %vm790, %v784, 0.0
        %798 = vadd.xlane.f32.xlu0 %v797
        %v799 = vpop.xlane.xlu0 %798
        %v800 = vsel %vm790, %v785, 0.0
        %801 = vadd.xlane.f32.xlu0 %v800
        %v802 = vpop.xlane.xlu0 %801
        %v803 = vsel %vm790, %v786, 0.0
        %804 = vadd.xlane.f32.xlu0 %v803
        %v805 = vpop.xlane.xlu0 %804
        %v806 = vsel %vm790, %v787, 0.0
        %807 = vadd.xlane.f32.xlu0 %v806
        %v808 = vpop.xlane.xlu0 %807
        %v809 = vsel %vm790, %v788, 0.0
        %810 = vadd.xlane.f32.xlu0 %v809
        %v811 = vpop.xlane.xlu0 %810
        %v812 = vsel %vm790, %v789, 0.0
        %813 = vadd.xlane.f32.xlu0 %v812
        %v814 = vpop.xlane.xlu0 %813
        %vm815 = vcmp.gt.f32.partialorder %v793, 0.0
        %vm816 = vcmp.gt.f32.partialorder %v796, 0.0
        %vm817 = vcmp.gt.f32.partialorder %v799, 0.0
        %vm818 = vcmp.gt.f32.partialorder %v802, 0.0
        %vm819 = vcmp.gt.f32.partialorder %v805, 0.0
        %vm820 = vcmp.gt.f32.partialorder %v808, 0.0
        %vm821 = vcmp.gt.f32.partialorder %v811, 0.0
        %vm822 = vcmp.gt.f32.partialorder %v814, 0.0
        %v823 = vsel %vm815, 1, 0
        %v824 = vsel %vm816, 1, 0
        %v825 = vsel %vm817, 1, 0
        %v826 = vsel %vm818, 1, 0
        %v827 = vsel %vm819, 1, 0
        %v828 = vsel %vm820, 1, 0
        %v829 = vsel %vm821, 1, 0
        %v830 = vsel %vm822, 1, 0
        %vm831 = vcmp.eq.s32.totalorder %v823, 1
        %vm832 = vcmp.eq.s32.totalorder %v824, 1
        %vm833 = vcmp.eq.s32.totalorder %v825, 1
        %vm834 = vcmp.eq.s32.totalorder %v826, 1
        %vm835 = vcmp.eq.s32.totalorder %v827, 1
        %vm836 = vcmp.eq.s32.totalorder %v828, 1
        %vm837 = vcmp.eq.s32.totalorder %v829, 1
        %vm838 = vcmp.eq.s32.totalorder %v830, 1
        %v839 = vsel %vm831, %v774, 0.0
        %v840 = vsel %vm832, %v775, 0.0
        %v841 = vsel %vm833, %v776, 0.0
        %v842 = vsel %vm834, %v777, 0.0
        %v843 = vsel %vm835, %v778, 0.0
        %v844 = vsel %vm836, %v779, 0.0
        %v845 = vsel %vm837, %v780, 0.0
        %v846 = vsel %vm838, %v781, 0.0
        %v847 = vrot.slane %v839, 4
        %v848 = vadd.f32 %v839, %v847
        %v849 = vrot.slane %v848, 2
        %v850 = vadd.f32 %v848, %v849
        %v851 = vrot.slane %v850, 1
        %v852 = vadd.f32 %v850, %v851
        %v853 = vrot.slane %v840, 4
        %v854 = vadd.f32 %v840, %v853
        %v855 = vrot.slane %v854, 2
        %v856 = vadd.f32 %v854, %v855
        %v857 = vrot.slane %v856, 1
        %v858 = vadd.f32 %v856, %v857
        %v859 = vrot.slane %v841, 4
        %v860 = vadd.f32 %v841, %v859
        %v861 = vrot.slane %v860, 2
        %v862 = vadd.f32 %v860, %v861
        %v863 = vrot.slane %v862, 1
        %v864 = vadd.f32 %v862, %v863
        %v865 = vrot.slane %v842, 4
        %v866 = vadd.f32 %v842, %v865
        %v867 = vrot.slane %v866, 2
        %v868 = vadd.f32 %v866, %v867
        %v869 = vrot.slane %v868, 1
        %v870 = vadd.f32 %v868, %v869
        %v871 = vrot.slane %v843, 4
        %v872 = vadd.f32 %v843, %v871
        %v873 = vrot.slane %v872, 2
        %v874 = vadd.f32 %v872, %v873
        %v875 = vrot.slane %v874, 1
        %v876 = vadd.f32 %v874, %v875
        %v877 = vrot.slane %v844, 4
        %v878 = vadd.f32 %v844, %v877
        %v879 = vrot.slane %v878, 2
        %v880 = vadd.f32 %v878, %v879
        %v881 = vrot.slane %v880, 1
        %v882 = vadd.f32 %v880, %v881
        %v883 = vrot.slane %v845, 4
        %v884 = vadd.f32 %v845, %v883
        %v885 = vrot.slane %v884, 2
        %v886 = vadd.f32 %v884, %v885
        %v887 = vrot.slane %v886, 1
        %v888 = vadd.f32 %v886, %v887
        %v889 = vrot.slane %v846, 4
        %v890 = vadd.f32 %v846, %v889
        %v891 = vrot.slane %v890, 2
        %v892 = vadd.f32 %v890, %v891
        %v893 = vrot.slane %v892, 1
        %v894 = vadd.f32 %v892, %v893
        %vm903 = vcmask 1041409
        %v904 = vsel %vm903, %v858, %v852
        %vm905 = vcmask 1042434
        %v906 = vsel %vm905, %v864, %v904
        %vm907 = vcmask 1043459
        %v908 = vsel %vm907, %v870, %v906
        %vm909 = vcmask 1044484
        %v910 = vsel %vm909, %v876, %v908
        %vm911 = vcmask 1045509
        %v912 = vsel %vm911, %v882, %v910
        %vm913 = vcmask 1046534
        %v914 = vsel %vm913, %v888, %v912
        %vm915 = vcmask 1047559
        %v916 = vsel %vm915, %v894, %v914
        %918 = vst [vmem:[%s235] sm:$0xff] %v916
        %s919 = sand.u32 %s138, 1
        %s920 = scalar_lea.sflag [#allocation4], %s919
        %s921 = sand.u32 %s138, 1
        %s922 = smul.addr %s921, 8
        %s923 = scalar_lea.vmem [#allocation5], %s922
        // Predicated region
        $region45: #{tpu_custom_call.1} parent=39 // pred_check
          %p924 = pneg %p148
        $region46: #{tpu_custom_call.1} parent=39 // pred_check_branch
          %926 = sbr.rel (%p924) target = $region48
        $region47: #{tpu_custom_call.1} parent=39 // pred_region
          %928 = vsyncadd %s920, 0
          %s929 = smul.addr %s20, 8
          %s930 = scalar_lea.hbm %s5, %s929
          %s932 = sshll.u32 %s923, 4
          %s933 = int_to_ptr.vmem [resolvable:$true] %s932
          %s934 = sshll.u32 %s930, 4
          %s935 = int_to_ptr.hbm [resolvable:$true] %s934
          %937 = dma.vmem_to_hbm [thread:$0]  %s933, 128, %s935, %s920
        $region48: #{tpu_custom_call.1} parent=39 // pred_fallthru
          _
      $region40: #{tpu_custom_call.1} parent=5 // pred_fallthru
        _
      %p938 = scmp.le.s32.totalorder 2, %s15
      // Predicated region
      $region49: #{tpu_custom_call.1} parent=5 // pred_check
        %p939 = pneg %p938
      $region50: #{tpu_custom_call.1} parent=5 // pred_check_branch
        %941 = sbr.rel (%p939) target = $region52
      $region51: #{tpu_custom_call.1} parent=5 // pred_region
        %s942 = ssub.s32 %s15, 2
        // Predicated region
        $region53: #{tpu_custom_call.1} parent=51 // pred_check
          %p943 = pneg %p154
        $region54: #{tpu_custom_call.1} parent=51 // pred_check_branch
          %945 = sbr.rel (%p943) target = $region56
        $region55: #{tpu_custom_call.1} parent=51 // pred_region
          %s946 = sand.u32 %s139, 1
          %s947 = scalar_lea.sflag [#allocation4], %s946
          %s948 = sand.u32 %s139, 1
          %s949 = smul.addr %s948, 8
          %s950 = scalar_lea.vmem [#allocation5], %s949
          %952 = dma.done %s947, 128
        $region56: #{tpu_custom_call.1} parent=51 // pred_fallthru
          _
      $region52: #{tpu_custom_call.1} parent=5 // pred_fallthru
        _
    $region6: #{tpu_custom_call.1} parent=1 // loop_footer
      %s19 = sadd.s32 1, %s15
    $region7: #{tpu_custom_call.1} parent=1 // loop_footer_branch
      %14 = sbr.rel target = $region3
    $region8: #{tpu_custom_call.1} parent=1 // loop_exit
      _
    %953 = vsyncpa [#allocation3], 1
    %s954 = scalar_lea.sflag [#allocation3], 1
    %955 = vsyncpa %s954, 1
    %956 = vsyncpa [#allocation4], 1
    %s957 = scalar_lea.sflag [#allocation4], 1
    %958 = vsyncpa %s957, 1

</llo_original>
